<compile_context>
chip_gen: v7x
topology: tpu7x:2x2x1
jax: 0.10.0
libtpu: 0.0.40
codegen_flags: <defaults>
</compile_context>

<pallas_src>
import functools

import jax
import jax.numpy as jnp
from jax.experimental import pallas as pl
from jax.experimental.pallas import tpu as pltpu

_HI = jax.lax.Precision.HIGHEST


def _round_up(n, m):
    return ((n + m - 1) // m) * m


def _pad_lanes(a, width):
    pad = width - a.shape[-1]
    if pad == 0:
        return a
    return jnp.pad(a, ((0, 0), (0, pad)))  # zero-fill: padded lanes must be exact zeros


def _vmem_budget_bytes():
    cap = 64 * 1024 * 1024  # conservative physical VMEM (v7x); v5e/v6e report 128 MiB
    try:
        info = pltpu.get_tpu_info()
        c = getattr(info, "vmem_capacity_bytes", None)
        if c:
            cap = int(c)
    except Exception:
        pass
    # ~25% headroom for compiler-internal scratch + constant weight buffers.
    return max(32 * 1024 * 1024, min((cap * 3) // 4, 100 * 1024 * 1024))


def _default_batch_tile(batch, oi_pad, budget):
    # ~14 live f32 slabs of (tile, oi_pad): 2 double-buffered big outputs (8 slabs)
    # plus compute temporaries (cheb, base_rep, postacts, sp broadcast, margin).
    cap = budget // (14 * oi_pad * 4)
    cap = max(8, min((cap // 8) * 8, 4096))
    if batch >= 16:
        # Keep >= 2 grid steps so the "parallel" batch axis feeds both v7x TCs.
        want = _round_up((batch + 1) // 2, 8)
    else:
        want = _round_up(batch, 8)
    return max(8, min(cap, want))


def _cheb_kan_kernel(x_ref, wcheb_ref, wbase_ref, sp_ref, wyb_ref, wyc_ref,
                     y_ref, postacts_ref, postcheb_ref, *, degree: int):
    f32 = jnp.float32
    x = x_ref[...]                               # (TB, I) f32
    z = jnp.tanh(x)                              # EUP
    base = x * jax.nn.sigmoid(x)                 # SiLU (EUP + VPU)

    # Chebyshev basis at narrow (TB, I) width; recurrence is tiny VPU work.
    ts = [jnp.ones_like(z)]                      # T_0
    if degree >= 1:
        ts.append(z)                             # T_1
        t_prev, t_curr = ts[0], z
        z2 = z + z
        for _ in range(2, degree + 1):
            t_next = z2 * t_curr - t_prev        # T_k = 2 z T_{k-1} - T_{k-2}
            ts.append(t_next)
            t_prev, t_curr = t_curr, t_next
    basis = ts[0] if len(ts) == 1 else jnp.concatenate(ts, axis=-1)   # (TB, K*I)

    # All heavy lifting on the (otherwise idle) MXU, f32-accurate accumulation.
    cheb = jnp.dot(basis, wcheb_ref[...], precision=_HI,
                   preferred_element_type=f32)   # (TB, OI_pad): replication + coef MAC
    base_rep = jnp.dot(base, wbase_ref[...], precision=_HI,
                       preferred_element_type=f32)  # scale_base*mask replicated
    postacts = base_rep + sp_ref[...] * cheb     # scale_sp*mask folded into sp_ref

    postcheb_ref[...] = cheb                     # lane-dense (128-multiple) stores
    postacts_ref[...] = postacts

    # y[b, o] = sum_i postacts[b, o, i] via narrow matmuls (scales/mask pre-folded).
    y_ref[...] = (jnp.dot(base, wyb_ref[...], precision=_HI, preferred_element_type=f32)
                  + jnp.dot(basis, wyc_ref[...], precision=_HI, preferred_element_type=f32))


def cheb_kan_forward(x, coef, scale_base, scale_sp, mask, *, degree: int,
                     batch_tile=None):
    f32 = jnp.float32
    x = x.astype(f32)
    batch, in_dim = x.shape
    out_dim = scale_base.shape[1]
    k = degree + 1
    oi = out_dim * in_dim
    oi_pad = _round_up(oi, 128)                  # lane-dense flattened output width
    ki = k * in_dim
    assert coef.shape == (in_dim, out_dim, k)

    # ---- one-time parameter re-layout (tiny XLA "layout plumbing") ----
    coef32 = coef.astype(f32)
    sbm = (scale_base * mask).astype(f32)        # (I, O), mask folded
    spm = (scale_sp * mask).astype(f32)          # (I, O), mask folded
    eye_i = jnp.eye(in_dim, dtype=f32)

    # Flattened output column j = o*in_dim + i (row-major (O, I) layout).
    # Block-sparse MXU weights, zero-padded along the lane axis to oi_pad:
    #   wcheb[k*I + i, o*I + i] = coef[i, o, k]
    #   wbase[i,       o*I + i] = (scale_base*mask)[i, o]
    wcheb = jnp.einsum('iok,ij->kioj', coef32, eye_i).reshape(ki, oi)
    wbase = jnp.einsum('io,ij->ioj', sbm, eye_i).reshape(in_dim, oi)
    sp_flat = spm.T.reshape(1, oi)
    wcheb = _pad_lanes(wcheb, oi_pad)
    wbase = _pad_lanes(wbase, oi_pad)
    sp_flat = _pad_lanes(sp_flat, oi_pad)
    # Narrow y weights: y = base @ wyb + basis @ wyc (scale_sp folded into wyc).
    wyb = sbm                                                         # (I, O)
    wyc = jnp.transpose(coef32 * spm[:, :, None], (2, 0, 1)).reshape(ki, out_dim)

    budget = _vmem_budget_bytes()
    if batch_tile is None:
        batch_tile = _default_batch_tile(batch, oi_pad, budget)
    padded_batch = _round_up(batch, batch_tile)
    if padded_batch != batch:
        x_pad = jnp.zeros((padded_batch, in_dim), f32).at[:batch].set(x)
    else:
        x_pad = x
    grid = (padded_batch // batch_tile,)

    kernel = functools.partial(_cheb_kan_kernel, degree=degree)

    out_shapes = (
        jax.ShapeDtypeStruct((padded_batch, out_dim), f32),   # y
        jax.ShapeDtypeStruct((padded_batch, oi_pad), f32),    # postacts (flat, padded)
        jax.ShapeDtypeStruct((padded_batch, oi_pad), f32),    # postcheb (flat, padded)
    )
    in_specs = [
        pl.BlockSpec((batch_tile, in_dim), lambda b: (b, 0)),   # x
        pl.BlockSpec((ki, oi_pad), lambda b: (0, 0)),           # wcheb  (K*I, OI_pad)
        pl.BlockSpec((in_dim, oi_pad), lambda b: (0, 0)),       # wbase  (I,   OI_pad)
        pl.BlockSpec((1, oi_pad), lambda b: (0, 0)),            # scale_sp*mask (flat)
        pl.BlockSpec((in_dim, out_dim), lambda b: (0, 0)),      # wyb    (I, O)
        pl.BlockSpec((ki, out_dim), lambda b: (0, 0)),          # wyc    (K*I, O)
    ]
    out_specs = (
        pl.BlockSpec((batch_tile, out_dim), lambda b: (b, 0)),
        pl.BlockSpec((batch_tile, oi_pad), lambda b: (b, 0)),
        pl.BlockSpec((batch_tile, oi_pad), lambda b: (b, 0)),
    )

    y_p, pa_f, pc_f = pl.pallas_call(
        kernel,
        out_shape=out_shapes,
        grid_spec=pltpu.PrefetchScalarGridSpec(
            num_scalar_prefetch=0,
            grid=grid,
            in_specs=in_specs,
            out_specs=out_specs,
        ),
        compiler_params=pltpu.CompilerParams(
            dimension_semantics=("parallel",),
            vmem_limit_bytes=int(budget),
        ),
    )(x_pad, wcheb, wbase, sp_flat, wyb, wyc)

    y = y_p[:batch]
    postacts = pa_f[:batch, :oi].reshape(batch, out_dim, in_dim)
    postcheb = pc_f[:batch, :oi].reshape(batch, out_dim, in_dim)
    # preacts is a pure broadcast of x with no dependence on the kernel compute:
    # let XLA produce it (removes one B*O*I store stream from the kernel).
    preacts = jnp.broadcast_to(x[:, None, :], (batch, out_dim, in_dim))
    return y, preacts, postacts, postcheb


def cheb_kan_reference(x, coef, scale_base, scale_sp, mask, degree):
    """Pure-JAX reference mirroring the PyTorch forward (exact f32)."""
    batch, in_dim = x.shape
    out_dim = scale_base.shape[1]
    z = jnp.tanh(x)
    ts = [jnp.ones_like(z), z]
    for _ in range(2, degree + 1):
        ts.append(2.0 * z * ts[-1] - ts[-2])
    basis = jnp.stack(ts[:degree + 1], axis=-1)                       # (B, I, K)
    cheb = jnp.einsum('bik,iok->bio', basis, coef, precision=_HI)     # (B, I, O)
    base = x * jax.nn.sigmoid(x)
    y3 = scale_base[None] * base[:, :, None] + scale_sp[None] * cheb
    y3 = mask[None] * y3
    y = jnp.sum(y3, axis=1)
    preacts = jnp.broadcast_to(x[:, None, :], (batch, out_dim, in_dim))
    postacts = jnp.transpose(y3, (0, 2, 1))
    postcheb = jnp.transpose(cheb, (0, 2, 1))
    return y, preacts, postacts, postcheb


if __name__ == "__main__":
    # Module hyperparameters (deterministic, synthetic init — no checkpoints).
    in_dim, out_dim, degree = 4, 8, 5
    noise_scale = 0.5
    scale_base_mu, scale_base_sigma = 0.0, 1.0
    scale_sp_val = 1.0
    batch = 16

    key = jax.random.PRNGKey(0)
    k_x, k_coef, k_sb = jax.random.split(key, 3)

    x = jax.random.normal(k_x, (batch, in_dim), dtype=jnp.float32)

    # coef = (rand(in, out, degree+1) - 1/2) * noise_scale
    coef = (jax.random.uniform(k_coef, (in_dim, out_dim, degree + 1),
                               dtype=jnp.float32) - 0.5) * noise_scale
    mask = jnp.ones((in_dim, out_dim), dtype=jnp.float32)
    scale_base = (scale_base_mu / jnp.sqrt(jnp.float32(in_dim))
                  + scale_base_sigma
                  * (jax.random.uniform(k_sb, (in_dim, out_dim),
                                        dtype=jnp.float32) * 2.0 - 1.0)
                  / jnp.sqrt(jnp.float32(in_dim)))
    scale_sp = jnp.ones((in_dim, out_dim), dtype=jnp.float32) * scale_sp_val * mask

    outs = cheb_kan_forward(x, coef, scale_base, scale_sp, mask, degree=degree)
    outs = jax.block_until_ready(outs)

    refs = cheb_kan_reference(x, coef, scale_base, scale_sp, mask, degree)
    names = ("y", "preacts", "postacts", "postchebyshev")
    for name, got, want in zip(names, outs, refs):
        assert got.shape == want.shape and got.dtype == want.dtype, name
        assert jnp.allclose(got, want, atol=1e-5, rtol=1e-5), f"mismatch: {name}"

    print("KERNEL_OK")
</pallas_src>

<mosaic_0001>
module attributes {stable_mosaic.version = 11 : i64} {
  func.func @_cheb_kan_kernel(%arg0: i32, %arg1: memref<8x4xf32, #tpu.memory_space<vmem>>, %arg2: memref<24x128xf32, #tpu.memory_space<vmem>>, %arg3: memref<4x128xf32, #tpu.memory_space<vmem>>, %arg4: memref<1x128xf32, #tpu.memory_space<vmem>>, %arg5: memref<4x8xf32, #tpu.memory_space<vmem>>, %arg6: memref<24x8xf32, #tpu.memory_space<vmem>>, %arg7: memref<8x8xf32, #tpu.memory_space<vmem>>, %arg8: memref<8x128xf32, #tpu.memory_space<vmem>>, %arg9: memref<8x128xf32, #tpu.memory_space<vmem>>) attributes {dimension_semantics = [#tpu.dimension_semantics<parallel>], iteration_bounds = array<i64: 2>, scalar_prefetch = 0 : i64, scratch_operands = 0 : i64, tpu.core_type = #tpu.core_type<tc>, window_params = [{transform_indices = @transform_0, window_bounds = array<i64: 8, 4>}, {pipeline_mode = #tpu.pipeline_mode<synchronous>, transform_indices = @transform_1, window_bounds = array<i64: 24, 128>}, {pipeline_mode = #tpu.pipeline_mode<synchronous>, transform_indices = @transform_2, window_bounds = array<i64: 4, 128>}, {pipeline_mode = #tpu.pipeline_mode<synchronous>, transform_indices = @transform_3, window_bounds = array<i64: 1, 128>}, {pipeline_mode = #tpu.pipeline_mode<synchronous>, transform_indices = @transform_4, window_bounds = array<i64: 4, 8>}, {pipeline_mode = #tpu.pipeline_mode<synchronous>, transform_indices = @transform_5, window_bounds = array<i64: 24, 8>}, {transform_indices = @transform_6, window_bounds = array<i64: 8, 8>}, {transform_indices = @transform_7, window_bounds = array<i64: 8, 128>}, {transform_indices = @transform_8, window_bounds = array<i64: 8, 128>}]} {
    %c0 = arith.constant 0 : index
    %c0_0 = arith.constant 0 : index
    %0 = vector.load %arg1[%c0, %c0_0] : memref<8x4xf32, #tpu.memory_space<vmem>>, vector<8x4xf32>
    %1 = math.tanh %0 : vector<8x4xf32>
    %2 = arith.negf %0 : vector<8x4xf32>
    %3 = math.exp %2 : vector<8x4xf32>
    %cst = arith.constant 1.000000e+00 : f32
    %4 = vector.broadcast %cst : f32 to vector<8x4xf32>
    %5 = arith.addf %4, %3 : vector<8x4xf32>
    %6 = arith.divf %4, %5 : vector<8x4xf32>
    %7 = arith.mulf %0, %6 : vector<8x4xf32>
    %cst_1 = arith.constant 1.000000e+00 : f32
    %8 = vector.broadcast %cst_1 : f32 to vector<8x4xf32>
    %9 = arith.addf %1, %1 : vector<8x4xf32>
    %10 = arith.mulf %9, %1 : vector<8x4xf32>
    %11 = arith.subf %10, %8 : vector<8x4xf32>
    %12 = arith.mulf %9, %11 : vector<8x4xf32>
    %13 = arith.subf %12, %1 : vector<8x4xf32>
    %14 = arith.mulf %9, %13 : vector<8x4xf32>
    %15 = arith.subf %14, %11 : vector<8x4xf32>
    %16 = arith.mulf %9, %15 : vector<8x4xf32>
    %17 = arith.subf %16, %13 : vector<8x4xf32>
    %18 = tpu.concatenate %8, %1, %11, %13, %15, %17 in 1 : vector<8x4xf32>, vector<8x4xf32>, vector<8x4xf32>, vector<8x4xf32>, vector<8x4xf32>, vector<8x4xf32> -> vector<8x24xf32>
    %c0_2 = arith.constant 0 : index
    %c0_3 = arith.constant 0 : index
    %19 = vector.load %arg2[%c0_2, %c0_3] : memref<24x128xf32, #tpu.memory_space<vmem>>, vector<24x128xf32>
    %cst_4 = arith.constant dense<0.000000e+00> : vector<8x128xf32>
    %20 = tpu.matmul %18, %19, %cst_4 {dimension_numbers = #tpu.dot_dimension_numbers<[1], [0], [0], [1], [0, 0, 1, 1], [], []>, precision = #tpu.contract_precision<fp32>} : vector<8x24xf32>, vector<24x128xf32>, vector<8x128xf32> -> vector<8x128xf32>
    %c0_5 = arith.constant 0 : index
    %c0_6 = arith.constant 0 : index
    %21 = vector.load %arg3[%c0_5, %c0_6] : memref<4x128xf32, #tpu.memory_space<vmem>>, vector<4x128xf32>
    %cst_7 = arith.constant dense<0.000000e+00> : vector<8x128xf32>
    %22 = tpu.matmul %7, %21, %cst_7 {dimension_numbers = #tpu.dot_dimension_numbers<[1], [0], [0], [1], [0, 0, 1, 1], [], []>, precision = #tpu.contract_precision<fp32>} : vector<8x4xf32>, vector<4x128xf32>, vector<8x128xf32> -> vector<8x128xf32>
    %c0_8 = arith.constant 0 : index
    %c0_9 = arith.constant 0 : index
    %23 = vector.load %arg4[%c0_8, %c0_9] : memref<1x128xf32, #tpu.memory_space<vmem>>, vector<1x128xf32>
    %24 = vector.broadcast %23 : vector<1x128xf32> to vector<8x128xf32>
    %25 = arith.mulf %24, %20 : vector<8x128xf32>
    %26 = arith.addf %22, %25 : vector<8x128xf32>
    %c0_10 = arith.constant 0 : index
    %c0_11 = arith.constant 0 : index
    %27 = vector.load %arg9[%c0_10, %c0_11] : memref<8x128xf32, #tpu.memory_space<vmem>>, vector<8x128xf32>
    tpu.vector_store %arg9[%c0_10, %c0_11], %20 {strides = array<i32>} : memref<8x128xf32, #tpu.memory_space<vmem>>, vector<8x128xf32>,
    %c0_12 = arith.constant 0 : index
    %c0_13 = arith.constant 0 : index
    %28 = vector.load %arg8[%c0_12, %c0_13] : memref<8x128xf32, #tpu.memory_space<vmem>>, vector<8x128xf32>
    tpu.vector_store %arg8[%c0_12, %c0_13], %26 {strides = array<i32>} : memref<8x128xf32, #tpu.memory_space<vmem>>, vector<8x128xf32>,
    %c0_14 = arith.constant 0 : index
    %c0_15 = arith.constant 0 : index
    %29 = vector.load %arg5[%c0_14, %c0_15] : memref<4x8xf32, #tpu.memory_space<vmem>>, vector<4x8xf32>
    %cst_16 = arith.constant dense<0.000000e+00> : vector<8x8xf32>
    %30 = tpu.matmul %7, %29, %cst_16 {dimension_numbers = #tpu.dot_dimension_numbers<[1], [0], [0], [1], [0, 0, 1, 1], [], []>, precision = #tpu.contract_precision<fp32>} : vector<8x4xf32>, vector<4x8xf32>, vector<8x8xf32> -> vector<8x8xf32>
    %c0_17 = arith.constant 0 : index
    %c0_18 = arith.constant 0 : index
    %31 = vector.load %arg6[%c0_17, %c0_18] : memref<24x8xf32, #tpu.memory_space<vmem>>, vector<24x8xf32>
    %cst_19 = arith.constant dense<0.000000e+00> : vector<8x8xf32>
    %32 = tpu.matmul %18, %31, %cst_19 {dimension_numbers = #tpu.dot_dimension_numbers<[1], [0], [0], [1], [0, 0, 1, 1], [], []>, precision = #tpu.contract_precision<fp32>} : vector<8x24xf32>, vector<24x8xf32>, vector<8x8xf32> -> vector<8x8xf32>
    %33 = arith.addf %30, %32 : vector<8x8xf32>
    %c0_20 = arith.constant 0 : index
    %c0_21 = arith.constant 0 : index
    %34 = vector.load %arg7[%c0_20, %c0_21] : memref<8x8xf32, #tpu.memory_space<vmem>>, vector<8x8xf32>
    tpu.vector_store %arg7[%c0_20, %c0_21], %33 {strides = array<i32>} : memref<8x8xf32, #tpu.memory_space<vmem>>, vector<8x8xf32>,
    return
  }
  func.func @transform_0(%arg0: i32) -> (i32, i32) {
    %c0_i32 = arith.constant 0 : i32
    %c0_i32_0 = arith.constant 0 : i32
    return %arg0, %c0_i32 : i32, i32
  }
  func.func @transform_1(%arg0: i32) -> (i32, i32) {
    %c0_i32 = arith.constant 0 : i32
    %c0_i32_0 = arith.constant 0 : i32
    %c0_i32_1 = arith.constant 0 : i32
    return %c0_i32, %c0_i32_0 : i32, i32
  }
  func.func @transform_2(%arg0: i32) -> (i32, i32) {
    %c0_i32 = arith.constant 0 : i32
    %c0_i32_0 = arith.constant 0 : i32
    %c0_i32_1 = arith.constant 0 : i32
    return %c0_i32, %c0_i32_0 : i32, i32
  }
  func.func @transform_3(%arg0: i32) -> (i32, i32) {
    %c0_i32 = arith.constant 0 : i32
    %c0_i32_0 = arith.constant 0 : i32
    %c0_i32_1 = arith.constant 0 : i32
    return %c0_i32, %c0_i32_0 : i32, i32
  }
  func.func @transform_4(%arg0: i32) -> (i32, i32) {
    %c0_i32 = arith.constant 0 : i32
    %c0_i32_0 = arith.constant 0 : i32
    %c0_i32_1 = arith.constant 0 : i32
    return %c0_i32, %c0_i32_0 : i32, i32
  }
  func.func @transform_5(%arg0: i32) -> (i32, i32) {
    %c0_i32 = arith.constant 0 : i32
    %c0_i32_0 = arith.constant 0 : i32
    %c0_i32_1 = arith.constant 0 : i32
    return %c0_i32, %c0_i32_0 : i32, i32
  }
  func.func @transform_6(%arg0: i32) -> (i32, i32) {
    %c0_i32 = arith.constant 0 : i32
    %c0_i32_0 = arith.constant 0 : i32
    return %arg0, %c0_i32 : i32, i32
  }
  func.func @transform_7(%arg0: i32) -> (i32, i32) {
    %c0_i32 = arith.constant 0 : i32
    %c0_i32_0 = arith.constant 0 : i32
    return %arg0, %c0_i32 : i32, i32
  }
  func.func @transform_8(%arg0: i32) -> (i32, i32) {
    %c0_i32 = arith.constant 0 : i32
    %c0_i32_0 = arith.constant 0 : i32
    return %arg0, %c0_i32 : i32, i32
  }
}

</mosaic_0001>

<llo_original>
// kernel: tpu_custom_call.1
$region0: #{tpu_custom_call.1}
  #allocation0 [shape = 'u32[]', space=smem, size = 0x4, offset = 0x4, fixed_abs, tag = 'smem constant byte address 0x4 - core index']
  #allocation1 [shape = 'u32[144,128]{1,0:T(1,128)}', space=vmem, size = 0x12000, scoped, tag = 'internal scratch']
  %s0 = inlined_call_operand.vmem [shape: f32[16,4], index: 0, kind: input, shape index: {}]
  %s1 = inlined_call_operand.vmem [shape: f32[24,128], index: 1, kind: input, shape index: {}]
  %s2 = inlined_call_operand.vmem [shape: f32[4,128], index: 2, kind: input, shape index: {}]
  %s3 = inlined_call_operand.vmem [shape: f32[1,128], index: 3, kind: input, shape index: {}]
  %s4 = inlined_call_operand.vmem [shape: f32[4,8], index: 4, kind: input, shape index: {}]
  %s5 = inlined_call_operand.vmem [shape: f32[24,8], index: 5, kind: input, shape index: {}]
  %s6 = inlined_call_operand.vmem [shape: f32[16,8], index: 6, kind: output, shape index: {0}]
  %s7 = inlined_call_operand.hbm [shape: f32[16,128], index: 7, kind: output, shape index: {1}]
  %s8 = inlined_call_operand.hbm [shape: f32[16,128], index: 8, kind: output, shape index: {2}]
  %9 = xla_tuple %s6, %s7, %s8
  %s10 = sld [smem:[#allocation0]]
  $region73: #{tpu_custom_call.1} parent=0
    _
  %s12 = ssub.s32 1, %s10
  %s13 = scalar_select 0, %s12, %s10
  $region1: #{tpu_custom_call.1} parent=0
    #allocation2 [shape = 'u8[8192]{0}', space=vmem, size = 0x2000, scoped, tag = 'output window, operand 1']
    #allocation3 [shape = 's32[2]{0}', space=sflag, size = 0x8, scoped, tag = 'scoped memory for tpu_custom_call.1']
    #allocation4 [shape = 'u8[8192]{0}', space=vmem, size = 0x2000, scoped, tag = 'output window, operand 2']
    #allocation5 [shape = 's32[2]{0}', space=sflag, size = 0x8, scoped, tag = 'scoped memory for tpu_custom_call.1']
    %14 = vsyncpa [#allocation3], 0
    %s15 = scalar_lea.sflag [#allocation3], 1
    %16 = vsyncpa %s15, 0
    %17 = vsyncpa [#allocation5], 0
    %s18 = scalar_lea.sflag [#allocation5], 1
    %19 = vsyncpa %s18, 0
    loop: start=0, step=1, limit=4
    $region2: #{tpu_custom_call.1} parent=1 // loop_pre_header
      _
    $region3: #{tpu_custom_call.1} parent=1 // loop_header
      %s21 = sphi 0, %s25
      %p22 = scmp.ge.s32.totalorder %s21, 4
      %s31 = sphi 0, %s33
      %s34 = sphi 0, %s31
      %s35 = sphi 0, %s34
      %s51 = sphi 0, %s35
      %s55 = sphi 0, %s55
      %s57 = sphi 0, %s55
      %s58 = sphi 0, %s57
      %s72 = sphi 0, %s58
      %s76 = sphi 0, %s76
      %s78 = sphi 0, %s76
      %s79 = sphi 0, %s78
      %s93 = sphi 0, %s79
      %s97 = sphi 0, %s97
      %s99 = sphi 0, %s97
      %s100 = sphi 0, %s99
      %s114 = sphi 0, %s100
      %s118 = sphi 0, %s118
      %s120 = sphi 0, %s118
      %s121 = sphi 0, %s120
      %s135 = sphi 0, %s121
      %s139 = sphi 0, %s139
      %s141 = sphi 0, %s139
      %s142 = sphi 0, %s141
      %s156 = sphi 0, %s142
      %s162 = sphi 0, %s164
      %s165 = sphi 0, %s162
      %s166 = sphi 0, %s165
      %s182 = sphi 0, %s166
      %s188 = sphi 0, %s190
      %s191 = sphi 0, %s188
      %s192 = sphi 0, %s191
      %s208 = sphi 0, %s192
      %s214 = sphi 0, %s216
      %s217 = sphi 0, %s214
      %s218 = sphi 0, %s217
      %s234 = sphi 0, %s218
    $region4: #{tpu_custom_call.1} parent=1 // loop_header_branch
      %24 = sbr.rel (%p22) target = $region8
    $region5: #{tpu_custom_call.1} parent=1 // loop_body
      %s26 = ssub.s32 %s21, 1
      %s27 = ssub.s32 %s21, 2
      %s28 = sadd.s32 %s21, 1
      %s29 = ssub.s32 %s21, %s28
      %p30 = scmp.eq.s32.totalorder %s29, 0
      %s32 = sadd.s32 %s31, 1
      %s33 = scalar_select %p30, %s31, %s32
      %p36 = pneg %p30
      %p37 = scmp.eq.s32.totalorder %s21, 1
      %p38 = por %p36, %p37
      %p39 = scmp.ne.s32.totalorder %s31, %s34
      %p40 = scmp.eq.s32.totalorder %s21, 0
      %p41 = por %p39, %p40
      %p42 = scmp.ne.s32.totalorder %s31, %s34
      %p43 = scmp.eq.s32.totalorder %s26, 1
      %p44 = por %p42, %p43
      %p45 = scmp.ne.s32.totalorder %s34, %s35
      %p46 = scmp.eq.s32.totalorder %s26, 0
      %p47 = por %p45, %p46
      %p48 = scmp.ne.s32.totalorder %s34, %s35
      %p49 = scmp.eq.s32.totalorder %s27, 1
      %p50 = por %p48, %p49
      %p52 = scmp.ne.s32.totalorder %s35, %s51
      %p53 = scmp.eq.s32.totalorder %s27, 0
      %p54 = por %p52, %p53
      %s56 = sadd.s32 %s55, 1
      %p59 = scmp.eq.s32.totalorder %s21, 1
      %p60 = scmp.ne.s32.totalorder %s55, %s57
      %p61 = scmp.eq.s32.totalorder %s21, 0
      %p62 = por %p60, %p61
      %p63 = scmp.ne.s32.totalorder %s55, %s57
      %p64 = scmp.eq.s32.totalorder %s26, 1
      %p65 = por %p63, %p64
      %p66 = scmp.ne.s32.totalorder %s57, %s58
      %p67 = scmp.eq.s32.totalorder %s26, 0
      %p68 = por %p66, %p67
      %p69 = scmp.ne.s32.totalorder %s57, %s58
      %p70 = scmp.eq.s32.totalorder %s27, 1
      %p71 = por %p69, %p70
      %p73 = scmp.ne.s32.totalorder %s58, %s72
      %p74 = scmp.eq.s32.totalorder %s27, 0
      %p75 = por %p73, %p74
      %s77 = sadd.s32 %s76, 1
      %p80 = scmp.eq.s32.totalorder %s21, 1
      %p81 = scmp.ne.s32.totalorder %s76, %s78
      %p82 = scmp.eq.s32.totalorder %s21, 0
      %p83 = por %p81, %p82
      %p84 = scmp.ne.s32.totalorder %s76, %s78
      %p85 = scmp.eq.s32.totalorder %s26, 1
      %p86 = por %p84, %p85
      %p87 = scmp.ne.s32.totalorder %s78, %s79
      %p88 = scmp.eq.s32.totalorder %s26, 0
      %p89 = por %p87, %p88
      %p90 = scmp.ne.s32.totalorder %s78, %s79
      %p91 = scmp.eq.s32.totalorder %s27, 1
      %p92 = por %p90, %p91
      %p94 = scmp.ne.s32.totalorder %s79, %s93
      %p95 = scmp.eq.s32.totalorder %s27, 0
      %p96 = por %p94, %p95
      %s98 = sadd.s32 %s97, 1
      %p101 = scmp.eq.s32.totalorder %s21, 1
      %p102 = scmp.ne.s32.totalorder %s97, %s99
      %p103 = scmp.eq.s32.totalorder %s21, 0
      %p104 = por %p102, %p103
      %p105 = scmp.ne.s32.totalorder %s97, %s99
      %p106 = scmp.eq.s32.totalorder %s26, 1
      %p107 = por %p105, %p106
      %p108 = scmp.ne.s32.totalorder %s99, %s100
      %p109 = scmp.eq.s32.totalorder %s26, 0
      %p110 = por %p108, %p109
      %p111 = scmp.ne.s32.totalorder %s99, %s100
      %p112 = scmp.eq.s32.totalorder %s27, 1
      %p113 = por %p111, %p112
      %p115 = scmp.ne.s32.totalorder %s100, %s114
      %p116 = scmp.eq.s32.totalorder %s27, 0
      %p117 = por %p115, %p116
      %s119 = sadd.s32 %s118, 1
      %p122 = scmp.eq.s32.totalorder %s21, 1
      %p123 = scmp.ne.s32.totalorder %s118, %s120
      %p124 = scmp.eq.s32.totalorder %s21, 0
      %p125 = por %p123, %p124
      %p126 = scmp.ne.s32.totalorder %s118, %s120
      %p127 = scmp.eq.s32.totalorder %s26, 1
      %p128 = por %p126, %p127
      %p129 = scmp.ne.s32.totalorder %s120, %s121
      %p130 = scmp.eq.s32.totalorder %s26, 0
      %p131 = por %p129, %p130
      %p132 = scmp.ne.s32.totalorder %s120, %s121
      %p133 = scmp.eq.s32.totalorder %s27, 1
      %p134 = por %p132, %p133
      %p136 = scmp.ne.s32.totalorder %s121, %s135
      %p137 = scmp.eq.s32.totalorder %s27, 0
      %p138 = por %p136, %p137
      %s140 = sadd.s32 %s139, 1
      %p143 = scmp.eq.s32.totalorder %s21, 1
      %p144 = scmp.ne.s32.totalorder %s139, %s141
      %p145 = scmp.eq.s32.totalorder %s21, 0
      %p146 = por %p144, %p145
      %p147 = scmp.ne.s32.totalorder %s139, %s141
      %p148 = scmp.eq.s32.totalorder %s26, 1
      %p149 = por %p147, %p148
      %p150 = scmp.ne.s32.totalorder %s141, %s142
      %p151 = scmp.eq.s32.totalorder %s26, 0
      %p152 = por %p150, %p151
      %p153 = scmp.ne.s32.totalorder %s141, %s142
      %p154 = scmp.eq.s32.totalorder %s27, 1
      %p155 = por %p153, %p154
      %p157 = scmp.ne.s32.totalorder %s142, %s156
      %p158 = scmp.eq.s32.totalorder %s27, 0
      %p159 = por %p157, %p158
      %s160 = ssub.s32 %s21, %s28
      %p161 = scmp.eq.s32.totalorder %s160, 0
      %s163 = sadd.s32 %s162, 1
      %s164 = scalar_select %p161, %s162, %s163
      %p167 = pneg %p161
      %p168 = scmp.eq.s32.totalorder %s21, 1
      %p169 = por %p167, %p168
      %p170 = scmp.ne.s32.totalorder %s162, %s165
      %p171 = scmp.eq.s32.totalorder %s21, 0
      %p172 = por %p170, %p171
      %p173 = scmp.ne.s32.totalorder %s162, %s165
      %p174 = scmp.eq.s32.totalorder %s26, 1
      %p175 = por %p173, %p174
      %p176 = scmp.ne.s32.totalorder %s165, %s166
      %p177 = scmp.eq.s32.totalorder %s26, 0
      %p178 = por %p176, %p177
      %p179 = scmp.ne.s32.totalorder %s165, %s166
      %p180 = scmp.eq.s32.totalorder %s27, 1
      %p181 = por %p179, %p180
      %p183 = scmp.ne.s32.totalorder %s166, %s182
      %p184 = scmp.eq.s32.totalorder %s27, 0
      %p185 = por %p183, %p184
      %s186 = ssub.s32 %s21, %s28
      %p187 = scmp.eq.s32.totalorder %s186, 0
      %s189 = sadd.s32 %s188, 1
      %s190 = scalar_select %p187, %s188, %s189
      %p193 = pneg %p187
      %p194 = scmp.eq.s32.totalorder %s21, 1
      %p195 = por %p193, %p194
      %p196 = scmp.ne.s32.totalorder %s188, %s191
      %p197 = scmp.eq.s32.totalorder %s21, 0
      %p198 = por %p196, %p197
      %p199 = scmp.ne.s32.totalorder %s188, %s191
      %p200 = scmp.eq.s32.totalorder %s26, 1
      %p201 = por %p199, %p200
      %p202 = scmp.ne.s32.totalorder %s191, %s192
      %p203 = scmp.eq.s32.totalorder %s26, 0
      %p204 = por %p202, %p203
      %p205 = scmp.ne.s32.totalorder %s191, %s192
      %p206 = scmp.eq.s32.totalorder %s27, 1
      %p207 = por %p205, %p206
      %p209 = scmp.ne.s32.totalorder %s192, %s208
      %p210 = scmp.eq.s32.totalorder %s27, 0
      %p211 = por %p209, %p210
      %s212 = ssub.s32 %s21, %s28
      %p213 = scmp.eq.s32.totalorder %s212, 0
      %s215 = sadd.s32 %s214, 1
      %s216 = scalar_select %p213, %s214, %s215
      %p219 = pneg %p213
      %p220 = scmp.eq.s32.totalorder %s21, 1
      %p221 = por %p219, %p220
      %p222 = scmp.ne.s32.totalorder %s214, %s217
      %p223 = scmp.eq.s32.totalorder %s21, 0
      %p224 = por %p222, %p223
      %p225 = scmp.ne.s32.totalorder %s214, %s217
      %p226 = scmp.eq.s32.totalorder %s26, 1
      %p227 = por %p225, %p226
      %p228 = scmp.ne.s32.totalorder %s217, %s218
      %p229 = scmp.eq.s32.totalorder %s26, 0
      %p230 = por %p228, %p229
      %p231 = scmp.ne.s32.totalorder %s217, %s218
      %p232 = scmp.eq.s32.totalorder %s27, 1
      %p233 = por %p231, %p232
      %p235 = scmp.ne.s32.totalorder %s218, %s234
      %p236 = scmp.eq.s32.totalorder %s27, 0
      %p237 = por %p235, %p236
      %p238 = scmp.le.s32.totalorder 1, %s21
      %p239 = scmp.lt.s32.totalorder %s21, 3
      %p240 = pnand %p238, %p239
      %p241 = pneg %p240
      // Predicated region
      $region9: #{tpu_custom_call.1} parent=5 // pred_check
        _
      $region10: #{tpu_custom_call.1} parent=5 // pred_check_branch
        %243 = sbr.rel (%p240) target = $region12
      $region11: #{tpu_custom_call.1} parent=5 // pred_region
        %s244 = ssub.s32 %s21, 1
        // Predicated region
        $region13: #{tpu_custom_call.1} parent=11 // pred_check
          %p245 = pneg %p68
        $region14: #{tpu_custom_call.1} parent=11 // pred_check_branch
          %247 = sbr.rel (%p245) target = $region16
        $region15: #{tpu_custom_call.1} parent=11 // pred_region
          _
        $region16: #{tpu_custom_call.1} parent=11 // pred_fallthru
          _
        // Predicated region
        $region17: #{tpu_custom_call.1} parent=11 // pred_check
          %p248 = pneg %p89
        $region18: #{tpu_custom_call.1} parent=11 // pred_check_branch
          %250 = sbr.rel (%p248) target = $region20
        $region19: #{tpu_custom_call.1} parent=11 // pred_region
          _
        $region20: #{tpu_custom_call.1} parent=11 // pred_fallthru
          _
        // Predicated region
        $region21: #{tpu_custom_call.1} parent=11 // pred_check
          %p251 = pneg %p110
        $region22: #{tpu_custom_call.1} parent=11 // pred_check_branch
          %253 = sbr.rel (%p251) target = $region24
        $region23: #{tpu_custom_call.1} parent=11 // pred_region
          _
        $region24: #{tpu_custom_call.1} parent=11 // pred_fallthru
          _
        // Predicated region
        $region25: #{tpu_custom_call.1} parent=11 // pred_check
          %p254 = pneg %p131
        $region26: #{tpu_custom_call.1} parent=11 // pred_check_branch
          %256 = sbr.rel (%p254) target = $region28
        $region27: #{tpu_custom_call.1} parent=11 // pred_region
          _
        $region28: #{tpu_custom_call.1} parent=11 // pred_fallthru
          _
        // Predicated region
        $region29: #{tpu_custom_call.1} parent=11 // pred_check
          %p257 = pneg %p152
        $region30: #{tpu_custom_call.1} parent=11 // pred_check_branch
          %259 = sbr.rel (%p257) target = $region32
        $region31: #{tpu_custom_call.1} parent=11 // pred_region
          _
        $region32: #{tpu_custom_call.1} parent=11 // pred_fallthru
          _
      $region12: #{tpu_custom_call.1} parent=5 // pred_fallthru
        _
      %p260 = scmp.lt.s32.totalorder %s21, 2
      // Predicated region
      $region33: #{tpu_custom_call.1} parent=5 // pred_check
        %p261 = pneg %p260
      $region34: #{tpu_custom_call.1} parent=5 // pred_check_branch
        %263 = sbr.rel (%p261) target = $region36
      $region35: #{tpu_custom_call.1} parent=5 // pred_region
        // Predicated region
        $region37: #{tpu_custom_call.1} parent=35 // pred_check
          %p264 = pneg %p41
        $region38: #{tpu_custom_call.1} parent=35 // pred_check_branch
          %266 = sbr.rel (%p264) target = $region40
        $region39: #{tpu_custom_call.1} parent=35 // pred_region
          %p267 = scmp.lt.s32.totalorder %s21, 1
          %s268 = scalar_select %p267, %s21, 1
          %s269 = smul.addr %s268, 8
          %s270 = scalar_lea.vmem %s0, %s269
        $region40: #{tpu_custom_call.1} parent=35 // pred_fallthru
          _
      $region36: #{tpu_custom_call.1} parent=5 // pred_fallthru
        _
      %p271 = scmp.le.s32.totalorder 1, %s21
      %p272 = scmp.lt.s32.totalorder %s21, 3
      %p273 = pnand %p271, %p272
      %p274 = pneg %p273
      // Predicated region
      $region41: #{tpu_custom_call.1} parent=5 // pred_check
        _
      $region42: #{tpu_custom_call.1} parent=5 // pred_check_branch
        %276 = sbr.rel (%p273) target = $region44
      $region43: #{tpu_custom_call.1} parent=5 // pred_region
        %s277 = ssub.s32 %s21, 1
        %p278 = scmp.lt.s32.totalorder %s26, 1
        %s279 = scalar_select %p278, %s26, 1
        %s280 = smul.addr %s279, 8
        %s281 = scalar_lea.vmem %s0, %s280
        %p282 = pneg %p47
        %p283 = pneg %p44
        %p284 = pneg %p68
        %p285 = pneg %p65
        %p286 = pneg %p89
        %p287 = pneg %p86
        %p288 = pneg %p110
        %p289 = pneg %p107
        %p290 = pneg %p131
        %p291 = pneg %p128
        %p292 = pneg %p152
        %p293 = pneg %p149
        %p294 = pneg %p178
        %p295 = pneg %p175
        %p296 = scmp.lt.s32.totalorder %s26, 1
        %s297 = scalar_select %p296, %s26, 1
        %s298 = smul.addr %s297, 8
        %s299 = scalar_lea.vmem %s6, %s298
        %p300 = pneg %p204
        %p301 = pneg %p201
        %s302 = sand.u32 %s191, 1
        %s303 = scalar_lea.sflag [#allocation3], %s302
        %s304 = sand.u32 %s191, 1
        %s305 = smul.addr %s304, 8
        %s306 = scalar_lea.vmem [#allocation2], %s305
        %p307 = pneg %p230
        %p308 = pneg %p227
        %s309 = sand.u32 %s217, 1
        %s310 = scalar_lea.sflag [#allocation5], %s309
        %s311 = sand.u32 %s217, 1
        %s312 = smul.addr %s311, 8
        %s313 = scalar_lea.vmem [#allocation4], %s312
        %p314 = scmp.lt.s32.totalorder %s26, 1
        %s315 = scalar_select %p314, %s26, 1
        %s316 = smul.addr %s315, 8
        %s317 = scalar_lea.vmem %s0, %s316
        %p318 = scmp.lt.s32.totalorder %s26, 1
        %s319 = scalar_select %p318, %s26, 1
        %s320 = smul.addr %s319, 8
        %s321 = scalar_lea.vmem %s6, %s320
        %v322 = vld [vmem:[%s317] sm:$0xff]
        %v323 = vtanh.pop %v322
        %v324 = vxor.u32 %v322, 2147483648
        %v325 = vmul.f32 %v324, 1.442695
        %v326 = vpow.pop %v325
        %v327 = vadd.f32 %v326, 1.0
        %v328 = vrcp.pop %v327
        %v329 = vmul.f32 1.0, %v328
        %v330 = vmul.f32 %v322, %v329
        %v331 = vadd.f32 %v323, %v323
        %v332 = vmul.f32 %v331, %v323
        %v333 = vsub.f32 %v332, 1.0
        %v334 = vmul.f32 %v331, %v333
        %v335 = vsub.f32 %v334, %v323
        %v336 = vmul.f32 %v331, %v335
        %v337 = vsub.f32 %v336, %v333
        %v338 = vmul.f32 %v331, %v337
        %v339 = vsub.f32 %v338, %v335
        %341 = vrot.lane.b32.xlu0 %v323, 4
        %v342 = vpop.permute.xlu0 %341
        %345 = vrot.lane.b32.xlu0 %v333, 8
        %v346 = vpop.permute.xlu0 %345
        %349 = vrot.lane.b32.xlu0 %v335, 12
        %v350 = vpop.permute.xlu0 %349
        %353 = vrot.lane.b32.xlu0 %v337, 16
        %v354 = vpop.permute.xlu0 %353
        %357 = vrot.lane.b32.xlu0 %v339, 20
        %v358 = vpop.permute.xlu0 %357
        %vm360 = vcmask 31744
        %v361 = vsel %vm360, 1.0, %v342
        %vm362 = vcmask 64512
        %v363 = vsel %vm362, %v361, %v346
        %vm364 = vcmask 97280
        %v365 = vsel %vm364, %v363, %v350
        %vm366 = vcmask 130048
        %v367 = vsel %vm366, %v365, %v354
        %vm368 = vcmask 162816
        %v369 = vsel %vm368, %v367, %v358
        %v370 = vld [vmem:[%s1] sm:$0xff]
        %v371 = vld [vmem:[%s1 + $0x8] sm:$0xff]
        %v372 = vld [vmem:[%s1 + $0x10] sm:$0xff]
        %vm373 = vcmask 195584
        %v375 = vsel %vm373, %v369, 0
        %377 = vmatprep.subr.mxu0 0.0
        %v378 = vand.u32 %v370, 4294901760
        %379 = vmatpush1.msra.mxu0 %v378
        %380 = vmatprep.subr.mxu0 0.0
        %v381 = vand.u32 %v371, 4294901760
        %382 = vmatpush1.msra.mxu0 %v381
        %383 = vmatprep.subr.mxu0 0.0
        %v384 = vand.u32 %v372, 4294901760
        %385 = vmatpush1.msra.mxu0 %v384
        %386 = vmatprep.subr.mxu0 0.0
        %387 = vmatpush1.msra.mxu0 0.0
        %388 = vmatprep.subr.mxu0 0.0
        %389 = vmatpush1.msra.mxu0 0.0
        %390 = vmatprep.subr.mxu0 0.0
        %391 = vmatpush1.msra.mxu0 0.0
        %392 = vmatprep.subr.mxu0 0.0
        %393 = vmatpush1.msra.mxu0 0.0
        %394 = vmatprep.subr.mxu0 0.0
        %395 = vmatpush1.msra.mxu0 0.0
        %396 = vmatprep.subr.mxu0 0.0
        %397 = vmatpush1.msra.mxu0 0.0
        %398 = vmatprep.subr.mxu0 0.0
        %399 = vmatpush1.msra.mxu0 0.0
        %400 = vmatprep.subr.mxu0 0.0
        %401 = vmatpush1.msra.mxu0 0.0
        %402 = vmatprep.subr.mxu0 0.0
        %403 = vmatpush1.msra.mxu0 0.0
        %404 = vmatprep.subr.mxu0 0.0
        %405 = vmatpush1.msra.mxu0 0.0
        %406 = vmatprep.subr.mxu0 0.0
        %407 = vmatpush1.msra.mxu0 0.0
        %408 = vmatprep.subr.mxu0 0.0
        %409 = vmatpush1.msra.mxu0 0.0
        %410 = vmatprep.subr.mxu0 0.0
        %411 = vmatpush1.msra.mxu0 0.0
        %412 = vmatprep.subr.mxu0 0.0
        %413 = vmatpush1.msra.mxu0 0.0
        %414 = vmatprep.subr.mxu0 0.0
        %415 = vmatpush1.msra.mxu0 0.0
        %416 = vmatprep.subr.mxu0 0.0
        %417 = vmatpush1.msra.mxu0 0.0
        %418 = vmatprep.subr.mxu0 0.0
        %419 = vmatpush1.msra.mxu0 0.0
        %420 = vmatprep.subr.mxu0 0.0
        %421 = vmatpush1.msra.mxu0 0.0
        %422 = vmatprep.subr.mxu0 0.0
        %423 = vmatpush1.msra.mxu0 0.0
        %424 = vmatprep.subr.mxu0 0.0
        %425 = vmatpush1.msra.mxu0 0.0
        %426 = vmatprep.subr.mxu0 0.0
        %427 = vmatpush1.msra.mxu0 0.0
        %428 = vmatprep.subr.mxu0 0.0
        %429 = vmatpush1.msra.mxu0 0.0
        %430 = vmatprep.subr.mxu0 0.0
        %431 = vmatpush1.msra.mxu0 0.0
        %432 = vmatprep.subr.mxu0 0.0
        %433 = vmatpush1.msra.mxu0 0.0
        %434 = vmatprep.subr.mxu0 0.0
        %435 = vmatpush1.msra.mxu0 0.0
        %436 = vmatprep.subr.mxu0 0.0
        %437 = vmatpush1.msra.mxu0 0.0
        %438 = vmatprep.subr.mxu0 0.0
        %439 = vmatpush1.msra.mxu0 0.0
        %440 = vmatprep.subr.mxu0 0.0
        %441 = vmatpush1.msra.mxu0 0.0
        %442 = vmatprep.subr.mxu0 0.0
        %443 = vmatpush1.msra.mxu0 0.0
        %444 = vmatprep.mubr.f32.mxu0 0.0
        %v445 = vand.u32 %v375, 4294901760
        %v446 = vsub.f32 %v375, %v445
        %v447 = vand.u32 %v446, 4294901760
        %v448 = vsub.f32 %v446, %v447
        %v449 = vand.u32 %v448, 4294901760
        %450 = vmatmul.mubr.f32.gmra.mrb[0].mxu0 %v449
        %v451 = vpop.f32.mrb[0].mxu0
        %v452 = vadd.f32 0.0, %v451
        %v453 = vpop.f32.mrb[0].mxu0
        %454 = vdwg.mxu0
        %455 = vmatprep.subr.mxu0 0.0
        %v456 = vand.u32 %v370, 4294901760
        %v457 = vsub.f32 %v370, %v456
        %v458 = vand.u32 %v457, 4294901760
        %v459 = vsub.f32 %v457, %v458
        %v460 = vand.u32 %v459, 4294901760
        %461 = vmatpush1.msra.mxu0 %v460
        %462 = vmatprep.subr.mxu0 0.0
        %v463 = vand.u32 %v371, 4294901760
        %v464 = vsub.f32 %v371, %v463
        %v465 = vand.u32 %v464, 4294901760
        %v466 = vsub.f32 %v464, %v465
        %v467 = vand.u32 %v466, 4294901760
        %468 = vmatpush1.msra.mxu0 %v467
        %469 = vmatprep.subr.mxu0 0.0
        %v470 = vand.u32 %v372, 4294901760
        %v471 = vsub.f32 %v372, %v470
        %v472 = vand.u32 %v471, 4294901760
        %v473 = vsub.f32 %v471, %v472
        %v474 = vand.u32 %v473, 4294901760
        %475 = vmatpush1.msra.mxu0 %v474
        %476 = vmatprep.subr.mxu0 0.0
        %477 = vmatpush1.msra.mxu0 0.0
        %478 = vmatprep.subr.mxu0 0.0
        %479 = vmatpush1.msra.mxu0 0.0
        %480 = vmatprep.subr.mxu0 0.0
        %481 = vmatpush1.msra.mxu0 0.0
        %482 = vmatprep.subr.mxu0 0.0
        %483 = vmatpush1.msra.mxu0 0.0
        %484 = vmatprep.subr.mxu0 0.0
        %485 = vmatpush1.msra.mxu0 0.0
        %486 = vmatprep.subr.mxu0 0.0
        %487 = vmatpush1.msra.mxu0 0.0
        %488 = vmatprep.subr.mxu0 0.0
        %489 = vmatpush1.msra.mxu0 0.0
        %490 = vmatprep.subr.mxu0 0.0
        %491 = vmatpush1.msra.mxu0 0.0
        %492 = vmatprep.subr.mxu0 0.0
        %493 = vmatpush1.msra.mxu0 0.0
        %494 = vmatprep.subr.mxu0 0.0
        %495 = vmatpush1.msra.mxu0 0.0
        %496 = vmatprep.subr.mxu0 0.0
        %497 = vmatpush1.msra.mxu0 0.0
        %498 = vmatprep.subr.mxu0 0.0
        %499 = vmatpush1.msra.mxu0 0.0
        %500 = vmatprep.subr.mxu0 0.0
        %501 = vmatpush1.msra.mxu0 0.0
        %502 = vmatprep.subr.mxu0 0.0
        %503 = vmatpush1.msra.mxu0 0.0
        %504 = vmatprep.subr.mxu0 0.0
        %505 = vmatpush1.msra.mxu0 0.0
        %506 = vmatprep.subr.mxu0 0.0
        %507 = vmatpush1.msra.mxu0 0.0
        %508 = vmatprep.subr.mxu0 0.0
        %509 = vmatpush1.msra.mxu0 0.0
        %510 = vmatprep.subr.mxu0 0.0
        %511 = vmatpush1.msra.mxu0 0.0
        %512 = vmatprep.subr.mxu0 0.0
        %513 = vmatpush1.msra.mxu0 0.0
        %514 = vmatprep.subr.mxu0 0.0
        %515 = vmatpush1.msra.mxu0 0.0
        %516 = vmatprep.subr.mxu0 0.0
        %517 = vmatpush1.msra.mxu0 0.0
        %518 = vmatprep.subr.mxu0 0.0
        %519 = vmatpush1.msra.mxu0 0.0
        %520 = vmatprep.subr.mxu0 0.0
        %521 = vmatpush1.msra.mxu0 0.0
        %522 = vmatprep.subr.mxu0 0.0
        %523 = vmatpush1.msra.mxu0 0.0
        %524 = vmatprep.subr.mxu0 0.0
        %525 = vmatpush1.msra.mxu0 0.0
        %526 = vmatprep.subr.mxu0 0.0
        %527 = vmatpush1.msra.mxu0 0.0
        %528 = vmatprep.subr.mxu0 0.0
        %529 = vmatpush1.msra.mxu0 0.0
        %530 = vmatprep.subr.mxu0 0.0
        %531 = vmatpush1.msra.mxu0 0.0
        %532 = vmatprep.subr.mxu0 0.0
        %533 = vmatpush1.msra.mxu0 0.0
        %534 = vmatprep.mubr.f32.mxu0 0.0
        %v535 = vand.u32 %v375, 4294901760
        %536 = vmatmul.mubr.f32.gmra.mrb[0].mxu0 %v535
        %v537 = vpop.f32.mrb[0].mxu0
        %v538 = vadd.f32 %v452, %v537
        %v539 = vpop.f32.mrb[0].mxu0
        %540 = vdwg.mxu0
        %541 = vmatprep.subr.mxu0 0.0
        %v542 = vand.u32 %v370, 4294901760
        %v543 = vsub.f32 %v370, %v542
        %544 = vmatpush1.msra.mxu0 %v543
        %545 = vmatprep.subr.mxu0 0.0
        %v546 = vand.u32 %v371, 4294901760
        %v547 = vsub.f32 %v371, %v546
        %548 = vmatpush1.msra.mxu0 %v547
        %549 = vmatprep.subr.mxu0 0.0
        %v550 = vand.u32 %v372, 4294901760
        %v551 = vsub.f32 %v372, %v550
        %552 = vmatpush1.msra.mxu0 %v551
        %553 = vmatprep.subr.mxu0 0.0
        %554 = vmatpush1.msra.mxu0 0.0
        %555 = vmatprep.subr.mxu0 0.0
        %556 = vmatpush1.msra.mxu0 0.0
        %557 = vmatprep.subr.mxu0 0.0
        %558 = vmatpush1.msra.mxu0 0.0
        %559 = vmatprep.subr.mxu0 0.0
        %560 = vmatpush1.msra.mxu0 0.0
        %561 = vmatprep.subr.mxu0 0.0
        %562 = vmatpush1.msra.mxu0 0.0
        %563 = vmatprep.subr.mxu0 0.0
        %564 = vmatpush1.msra.mxu0 0.0
        %565 = vmatprep.subr.mxu0 0.0
        %566 = vmatpush1.msra.mxu0 0.0
        %567 = vmatprep.subr.mxu0 0.0
        %568 = vmatpush1.msra.mxu0 0.0
        %569 = vmatprep.subr.mxu0 0.0
        %570 = vmatpush1.msra.mxu0 0.0
        %571 = vmatprep.subr.mxu0 0.0
        %572 = vmatpush1.msra.mxu0 0.0
        %573 = vmatprep.subr.mxu0 0.0
        %574 = vmatpush1.msra.mxu0 0.0
        %575 = vmatprep.subr.mxu0 0.0
        %576 = vmatpush1.msra.mxu0 0.0
        %577 = vmatprep.subr.mxu0 0.0
        %578 = vmatpush1.msra.mxu0 0.0
        %579 = vmatprep.subr.mxu0 0.0
        %580 = vmatpush1.msra.mxu0 0.0
        %581 = vmatprep.subr.mxu0 0.0
        %582 = vmatpush1.msra.mxu0 0.0
        %583 = vmatprep.subr.mxu0 0.0
        %584 = vmatpush1.msra.mxu0 0.0
        %585 = vmatprep.subr.mxu0 0.0
        %586 = vmatpush1.msra.mxu0 0.0
        %587 = vmatprep.subr.mxu0 0.0
        %588 = vmatpush1.msra.mxu0 0.0
        %589 = vmatprep.subr.mxu0 0.0
        %590 = vmatpush1.msra.mxu0 0.0
        %591 = vmatprep.subr.mxu0 0.0
        %592 = vmatpush1.msra.mxu0 0.0
        %593 = vmatprep.subr.mxu0 0.0
        %594 = vmatpush1.msra.mxu0 0.0
        %595 = vmatprep.subr.mxu0 0.0
        %596 = vmatpush1.msra.mxu0 0.0
        %597 = vmatprep.subr.mxu0 0.0
        %598 = vmatpush1.msra.mxu0 0.0
        %599 = vmatprep.subr.mxu0 0.0
        %600 = vmatpush1.msra.mxu0 0.0
        %601 = vmatprep.subr.mxu0 0.0
        %602 = vmatpush1.msra.mxu0 0.0
        %603 = vmatprep.subr.mxu0 0.0
        %604 = vmatpush1.msra.mxu0 0.0
        %605 = vmatprep.subr.mxu0 0.0
        %606 = vmatpush1.msra.mxu0 0.0
        %607 = vmatprep.subr.mxu0 0.0
        %608 = vmatpush1.msra.mxu0 0.0
        %609 = vmatprep.subr.mxu0 0.0
        %610 = vmatpush1.msra.mxu0 0.0
        %611 = vmatprep.mubr.f32.mxu0 0.0
        %v612 = vand.u32 %v375, 4294901760
        %v613 = vsub.f32 %v375, %v612
        %614 = vmatmul.mubr.f32.gmra.mrb[0].mxu0 %v613
        %v615 = vpop.f32.mrb[0].mxu0
        %v616 = vadd.f32 %v538, %v615
        %v617 = vpop.f32.mrb[0].mxu0
        %618 = vdwg.mxu0
        %619 = vmatprep.subr.mxu0 0.0
        %v620 = vand.u32 %v370, 4294901760
        %621 = vmatpush1.msra.mxu0 %v620
        %622 = vmatprep.subr.mxu0 0.0
        %v623 = vand.u32 %v371, 4294901760
        %624 = vmatpush1.msra.mxu0 %v623
        %625 = vmatprep.subr.mxu0 0.0
        %v626 = vand.u32 %v372, 4294901760
        %627 = vmatpush1.msra.mxu0 %v626
        %628 = vmatprep.subr.mxu0 0.0
        %629 = vmatpush1.msra.mxu0 0.0
        %630 = vmatprep.subr.mxu0 0.0
        %631 = vmatpush1.msra.mxu0 0.0
        %632 = vmatprep.subr.mxu0 0.0
        %633 = vmatpush1.msra.mxu0 0.0
        %634 = vmatprep.subr.mxu0 0.0
        %635 = vmatpush1.msra.mxu0 0.0
        %636 = vmatprep.subr.mxu0 0.0
        %637 = vmatpush1.msra.mxu0 0.0
        %638 = vmatprep.subr.mxu0 0.0
        %639 = vmatpush1.msra.mxu0 0.0
        %640 = vmatprep.subr.mxu0 0.0
        %641 = vmatpush1.msra.mxu0 0.0
        %642 = vmatprep.subr.mxu0 0.0
        %643 = vmatpush1.msra.mxu0 0.0
        %644 = vmatprep.subr.mxu0 0.0
        %645 = vmatpush1.msra.mxu0 0.0
        %646 = vmatprep.subr.mxu0 0.0
        %647 = vmatpush1.msra.mxu0 0.0
        %648 = vmatprep.subr.mxu0 0.0
        %649 = vmatpush1.msra.mxu0 0.0
        %650 = vmatprep.subr.mxu0 0.0
        %651 = vmatpush1.msra.mxu0 0.0
        %652 = vmatprep.subr.mxu0 0.0
        %653 = vmatpush1.msra.mxu0 0.0
        %654 = vmatprep.subr.mxu0 0.0
        %655 = vmatpush1.msra.mxu0 0.0
        %656 = vmatprep.subr.mxu0 0.0
        %657 = vmatpush1.msra.mxu0 0.0
        %658 = vmatprep.subr.mxu0 0.0
        %659 = vmatpush1.msra.mxu0 0.0
        %660 = vmatprep.subr.mxu0 0.0
        %661 = vmatpush1.msra.mxu0 0.0
        %662 = vmatprep.subr.mxu0 0.0
        %663 = vmatpush1.msra.mxu0 0.0
        %664 = vmatprep.subr.mxu0 0.0
        %665 = vmatpush1.msra.mxu0 0.0
        %666 = vmatprep.subr.mxu0 0.0
        %667 = vmatpush1.msra.mxu0 0.0
        %668 = vmatprep.subr.mxu0 0.0
        %669 = vmatpush1.msra.mxu0 0.0
        %670 = vmatprep.subr.mxu0 0.0
        %671 = vmatpush1.msra.mxu0 0.0
        %672 = vmatprep.subr.mxu0 0.0
        %673 = vmatpush1.msra.mxu0 0.0
        %674 = vmatprep.subr.mxu0 0.0
        %675 = vmatpush1.msra.mxu0 0.0
        %676 = vmatprep.subr.mxu0 0.0
        %677 = vmatpush1.msra.mxu0 0.0
        %678 = vmatprep.subr.mxu0 0.0
        %679 = vmatpush1.msra.mxu0 0.0
        %680 = vmatprep.subr.mxu0 0.0
        %681 = vmatpush1.msra.mxu0 0.0
        %682 = vmatprep.subr.mxu0 0.0
        %683 = vmatpush1.msra.mxu0 0.0
        %684 = vmatprep.subr.mxu0 0.0
        %685 = vmatpush1.msra.mxu0 0.0
        %686 = vmatprep.mubr.f32.mxu0 0.0
        %v687 = vand.u32 %v375, 4294901760
        %v688 = vsub.f32 %v375, %v687
        %v689 = vand.u32 %v688, 4294901760
        %690 = vmatmul.mubr.f32.gmra.mrb[0].mxu0 %v689
        %v691 = vpop.f32.mrb[0].mxu0
        %v692 = vadd.f32 %v616, %v691
        %v693 = vpop.f32.mrb[0].mxu0
        %694 = vdwg.mxu0
        %695 = vmatprep.subr.mxu0 0.0
        %v696 = vand.u32 %v370, 4294901760
        %v697 = vsub.f32 %v370, %v696
        %v698 = vand.u32 %v697, 4294901760
        %699 = vmatpush1.msra.mxu0 %v698
        %700 = vmatprep.subr.mxu0 0.0
        %v701 = vand.u32 %v371, 4294901760
        %v702 = vsub.f32 %v371, %v701
        %v703 = vand.u32 %v702, 4294901760
        %704 = vmatpush1.msra.mxu0 %v703
        %705 = vmatprep.subr.mxu0 0.0
        %v706 = vand.u32 %v372, 4294901760
        %v707 = vsub.f32 %v372, %v706
        %v708 = vand.u32 %v707, 4294901760
        %709 = vmatpush1.msra.mxu0 %v708
        %710 = vmatprep.subr.mxu0 0.0
        %711 = vmatpush1.msra.mxu0 0.0
        %712 = vmatprep.subr.mxu0 0.0
        %713 = vmatpush1.msra.mxu0 0.0
        %714 = vmatprep.subr.mxu0 0.0
        %715 = vmatpush1.msra.mxu0 0.0
        %716 = vmatprep.subr.mxu0 0.0
        %717 = vmatpush1.msra.mxu0 0.0
        %718 = vmatprep.subr.mxu0 0.0
        %719 = vmatpush1.msra.mxu0 0.0
        %720 = vmatprep.subr.mxu0 0.0
        %721 = vmatpush1.msra.mxu0 0.0
        %722 = vmatprep.subr.mxu0 0.0
        %723 = vmatpush1.msra.mxu0 0.0
        %724 = vmatprep.subr.mxu0 0.0
        %725 = vmatpush1.msra.mxu0 0.0
        %726 = vmatprep.subr.mxu0 0.0
        %727 = vmatpush1.msra.mxu0 0.0
        %728 = vmatprep.subr.mxu0 0.0
        %729 = vmatpush1.msra.mxu0 0.0
        %730 = vmatprep.subr.mxu0 0.0
        %731 = vmatpush1.msra.mxu0 0.0
        %732 = vmatprep.subr.mxu0 0.0
        %733 = vmatpush1.msra.mxu0 0.0
        %734 = vmatprep.subr.mxu0 0.0
        %735 = vmatpush1.msra.mxu0 0.0
        %736 = vmatprep.subr.mxu0 0.0
        %737 = vmatpush1.msra.mxu0 0.0
        %738 = vmatprep.subr.mxu0 0.0
        %739 = vmatpush1.msra.mxu0 0.0
        %740 = vmatprep.subr.mxu0 0.0
        %741 = vmatpush1.msra.mxu0 0.0
        %742 = vmatprep.subr.mxu0 0.0
        %743 = vmatpush1.msra.mxu0 0.0
        %744 = vmatprep.subr.mxu0 0.0
        %745 = vmatpush1.msra.mxu0 0.0
        %746 = vmatprep.subr.mxu0 0.0
        %747 = vmatpush1.msra.mxu0 0.0
        %748 = vmatprep.subr.mxu0 0.0
        %749 = vmatpush1.msra.mxu0 0.0
        %750 = vmatprep.subr.mxu0 0.0
        %751 = vmatpush1.msra.mxu0 0.0
        %752 = vmatprep.subr.mxu0 0.0
        %753 = vmatpush1.msra.mxu0 0.0
        %754 = vmatprep.subr.mxu0 0.0
        %755 = vmatpush1.msra.mxu0 0.0
        %756 = vmatprep.subr.mxu0 0.0
        %757 = vmatpush1.msra.mxu0 0.0
        %758 = vmatprep.subr.mxu0 0.0
        %759 = vmatpush1.msra.mxu0 0.0
        %760 = vmatprep.subr.mxu0 0.0
        %761 = vmatpush1.msra.mxu0 0.0
        %762 = vmatprep.subr.mxu0 0.0
        %763 = vmatpush1.msra.mxu0 0.0
        %764 = vmatprep.subr.mxu0 0.0
        %765 = vmatpush1.msra.mxu0 0.0
        %766 = vmatprep.subr.mxu0 0.0
        %767 = vmatpush1.msra.mxu0 0.0
        %768 = vmatprep.mubr.f32.mxu0 0.0
        %v769 = vand.u32 %v375, 4294901760
        %770 = vmatmul.mubr.f32.gmra.mrb[0].mxu0 %v769
        %v771 = vpop.f32.mrb[0].mxu0
        %v772 = vadd.f32 %v692, %v771
        %v773 = vpop.f32.mrb[0].mxu0
        %774 = vdwg.mxu0
        %775 = vmatprep.subr.mxu0 0.0
        %v776 = vand.u32 %v370, 4294901760
        %777 = vmatpush1.msra.mxu0 %v776
        %778 = vmatprep.subr.mxu0 0.0
        %v779 = vand.u32 %v371, 4294901760
        %780 = vmatpush1.msra.mxu0 %v779
        %781 = vmatprep.subr.mxu0 0.0
        %v782 = vand.u32 %v372, 4294901760
        %783 = vmatpush1.msra.mxu0 %v782
        %784 = vmatprep.subr.mxu0 0.0
        %785 = vmatpush1.msra.mxu0 0.0
        %786 = vmatprep.subr.mxu0 0.0
        %787 = vmatpush1.msra.mxu0 0.0
        %788 = vmatprep.subr.mxu0 0.0
        %789 = vmatpush1.msra.mxu0 0.0
        %790 = vmatprep.subr.mxu0 0.0
        %791 = vmatpush1.msra.mxu0 0.0
        %792 = vmatprep.subr.mxu0 0.0
        %793 = vmatpush1.msra.mxu0 0.0
        %794 = vmatprep.subr.mxu0 0.0
        %795 = vmatpush1.msra.mxu0 0.0
        %796 = vmatprep.subr.mxu0 0.0
        %797 = vmatpush1.msra.mxu0 0.0
        %798 = vmatprep.subr.mxu0 0.0
        %799 = vmatpush1.msra.mxu0 0.0
        %800 = vmatprep.subr.mxu0 0.0
        %801 = vmatpush1.msra.mxu0 0.0
        %802 = vmatprep.subr.mxu0 0.0
        %803 = vmatpush1.msra.mxu0 0.0
        %804 = vmatprep.subr.mxu0 0.0
        %805 = vmatpush1.msra.mxu0 0.0
        %806 = vmatprep.subr.mxu0 0.0
        %807 = vmatpush1.msra.mxu0 0.0
        %808 = vmatprep.subr.mxu0 0.0
        %809 = vmatpush1.msra.mxu0 0.0
        %810 = vmatprep.subr.mxu0 0.0
        %811 = vmatpush1.msra.mxu0 0.0
        %812 = vmatprep.subr.mxu0 0.0
        %813 = vmatpush1.msra.mxu0 0.0
        %814 = vmatprep.subr.mxu0 0.0
        %815 = vmatpush1.msra.mxu0 0.0
        %816 = vmatprep.subr.mxu0 0.0
        %817 = vmatpush1.msra.mxu0 0.0
        %818 = vmatprep.subr.mxu0 0.0
        %819 = vmatpush1.msra.mxu0 0.0
        %820 = vmatprep.subr.mxu0 0.0
        %821 = vmatpush1.msra.mxu0 0.0
        %822 = vmatprep.subr.mxu0 0.0
        %823 = vmatpush1.msra.mxu0 0.0
        %824 = vmatprep.subr.mxu0 0.0
        %825 = vmatpush1.msra.mxu0 0.0
        %826 = vmatprep.subr.mxu0 0.0
        %827 = vmatpush1.msra.mxu0 0.0
        %828 = vmatprep.subr.mxu0 0.0
        %829 = vmatpush1.msra.mxu0 0.0
        %830 = vmatprep.subr.mxu0 0.0
        %831 = vmatpush1.msra.mxu0 0.0
        %832 = vmatprep.subr.mxu0 0.0
        %833 = vmatpush1.msra.mxu0 0.0
        %834 = vmatprep.subr.mxu0 0.0
        %835 = vmatpush1.msra.mxu0 0.0
        %836 = vmatprep.subr.mxu0 0.0
        %837 = vmatpush1.msra.mxu0 0.0
        %838 = vmatprep.subr.mxu0 0.0
        %839 = vmatpush1.msra.mxu0 0.0
        %840 = vmatprep.subr.mxu0 0.0
        %841 = vmatpush1.msra.mxu0 0.0
        %842 = vmatprep.mubr.f32.mxu0 0.0
        %v843 = vand.u32 %v375, 4294901760
        %844 = vmatmul.mubr.f32.gmra.mrb[0].mxu0 %v843
        %v845 = vpop.f32.mrb[0].mxu0
        %v846 = vadd.f32 %v772, %v845
        %v847 = vpop.f32.mrb[0].mxu0
        %848 = vdwg.mxu0
        %v849 = vld [vmem:[%s2] sm:$0xf]
        %v850 = vld [vmem:[%s3] sm:$0x1]
        %v852 = vlaneseq
        %v853 = vshrl.u32 %v852, 7
        %v854 = vsub.s32 0, %v853
        %v855 = vrot.slane %v850, %v854
        %v857 = vmul.f32 %v855, %v846
        %v859 = vsel %vm360, %v330, 0
        %vm861 = vcmask 1043456
        %v863 = vsel %vm861, %v849, 0
        %865 = vmatprep.subr.mxu0 0.0
        %v866 = vand.u32 %v863, 4294901760
        %867 = vmatpush1.msra.mxu0 %v866
        %868 = vmatprep.subr.mxu0 0.0
        %869 = vmatpush1.msra.mxu0 0.0
        %870 = vmatprep.subr.mxu0 0.0
        %871 = vmatpush1.msra.mxu0 0.0
        %872 = vmatprep.subr.mxu0 0.0
        %873 = vmatpush1.msra.mxu0 0.0
        %874 = vmatprep.subr.mxu0 0.0
        %875 = vmatpush1.msra.mxu0 0.0
        %876 = vmatprep.subr.mxu0 0.0
        %877 = vmatpush1.msra.mxu0 0.0
        %878 = vmatprep.subr.mxu0 0.0
        %879 = vmatpush1.msra.mxu0 0.0
        %880 = vmatprep.subr.mxu0 0.0
        %881 = vmatpush1.msra.mxu0 0.0
        %882 = vmatprep.subr.mxu0 0.0
        %883 = vmatpush1.msra.mxu0 0.0
        %884 = vmatprep.subr.mxu0 0.0
        %885 = vmatpush1.msra.mxu0 0.0
        %886 = vmatprep.subr.mxu0 0.0
        %887 = vmatpush1.msra.mxu0 0.0
        %888 = vmatprep.subr.mxu0 0.0
        %889 = vmatpush1.msra.mxu0 0.0
        %890 = vmatprep.subr.mxu0 0.0
        %891 = vmatpush1.msra.mxu0 0.0
        %892 = vmatprep.subr.mxu0 0.0
        %893 = vmatpush1.msra.mxu0 0.0
        %894 = vmatprep.subr.mxu0 0.0
        %895 = vmatpush1.msra.mxu0 0.0
        %896 = vmatprep.subr.mxu0 0.0
        %897 = vmatpush1.msra.mxu0 0.0
        %898 = vmatprep.subr.mxu0 0.0
        %899 = vmatpush1.msra.mxu0 0.0
        %900 = vmatprep.subr.mxu0 0.0
        %901 = vmatpush1.msra.mxu0 0.0
        %902 = vmatprep.subr.mxu0 0.0
        %903 = vmatpush1.msra.mxu0 0.0
        %904 = vmatprep.subr.mxu0 0.0
        %905 = vmatpush1.msra.mxu0 0.0
        %906 = vmatprep.subr.mxu0 0.0
        %907 = vmatpush1.msra.mxu0 0.0
        %908 = vmatprep.subr.mxu0 0.0
        %909 = vmatpush1.msra.mxu0 0.0
        %910 = vmatprep.subr.mxu0 0.0
        %911 = vmatpush1.msra.mxu0 0.0
        %912 = vmatprep.subr.mxu0 0.0
        %913 = vmatpush1.msra.mxu0 0.0
        %914 = vmatprep.subr.mxu0 0.0
        %915 = vmatpush1.msra.mxu0 0.0
        %916 = vmatprep.subr.mxu0 0.0
        %917 = vmatpush1.msra.mxu0 0.0
        %918 = vmatprep.subr.mxu0 0.0
        %919 = vmatpush1.msra.mxu0 0.0
        %920 = vmatprep.subr.mxu0 0.0
        %921 = vmatpush1.msra.mxu0 0.0
        %922 = vmatprep.subr.mxu0 0.0
        %923 = vmatpush1.msra.mxu0 0.0
        %924 = vmatprep.subr.mxu0 0.0
        %925 = vmatpush1.msra.mxu0 0.0
        %926 = vmatprep.subr.mxu0 0.0
        %927 = vmatpush1.msra.mxu0 0.0
        %928 = vmatprep.subr.mxu0 0.0
        %929 = vmatpush1.msra.mxu0 0.0
        %930 = vmatprep.mubr.f32.mxu0 0.0
        %v931 = vand.u32 %v859, 4294901760
        %v932 = vsub.f32 %v859, %v931
        %v933 = vand.u32 %v932, 4294901760
        %v934 = vsub.f32 %v932, %v933
        %v935 = vand.u32 %v934, 4294901760
        %936 = vmatmul.mubr.f32.gmra.mrb[0].mxu0 %v935
        %v937 = vpop.f32.mrb[0].mxu0
        %v938 = vadd.f32 %v857, %v937
        %v939 = vpop.f32.mrb[0].mxu0
        %940 = vdwg.mxu0
        %941 = vmatprep.subr.mxu0 0.0
        %v942 = vand.u32 %v863, 4294901760
        %v943 = vsub.f32 %v863, %v942
        %v944 = vand.u32 %v943, 4294901760
        %v945 = vsub.f32 %v943, %v944
        %v946 = vand.u32 %v945, 4294901760
        %947 = vmatpush1.msra.mxu0 %v946
        %948 = vmatprep.subr.mxu0 0.0
        %949 = vmatpush1.msra.mxu0 0.0
        %950 = vmatprep.subr.mxu0 0.0
        %951 = vmatpush1.msra.mxu0 0.0
        %952 = vmatprep.subr.mxu0 0.0
        %953 = vmatpush1.msra.mxu0 0.0
        %954 = vmatprep.subr.mxu0 0.0
        %955 = vmatpush1.msra.mxu0 0.0
        %956 = vmatprep.subr.mxu0 0.0
        %957 = vmatpush1.msra.mxu0 0.0
        %958 = vmatprep.subr.mxu0 0.0
        %959 = vmatpush1.msra.mxu0 0.0
        %960 = vmatprep.subr.mxu0 0.0
        %961 = vmatpush1.msra.mxu0 0.0
        %962 = vmatprep.subr.mxu0 0.0
        %963 = vmatpush1.msra.mxu0 0.0
        %964 = vmatprep.subr.mxu0 0.0
        %965 = vmatpush1.msra.mxu0 0.0
        %966 = vmatprep.subr.mxu0 0.0
        %967 = vmatpush1.msra.mxu0 0.0
        %968 = vmatprep.subr.mxu0 0.0
        %969 = vmatpush1.msra.mxu0 0.0
        %970 = vmatprep.subr.mxu0 0.0
        %971 = vmatpush1.msra.mxu0 0.0
        %972 = vmatprep.subr.mxu0 0.0
        %973 = vmatpush1.msra.mxu0 0.0
        %974 = vmatprep.subr.mxu0 0.0
        %975 = vmatpush1.msra.mxu0 0.0
        %976 = vmatprep.subr.mxu0 0.0
        %977 = vmatpush1.msra.mxu0 0.0
        %978 = vmatprep.subr.mxu0 0.0
        %979 = vmatpush1.msra.mxu0 0.0
        %980 = vmatprep.subr.mxu0 0.0
        %981 = vmatpush1.msra.mxu0 0.0
        %982 = vmatprep.subr.mxu0 0.0
        %983 = vmatpush1.msra.mxu0 0.0
        %984 = vmatprep.subr.mxu0 0.0
        %985 = vmatpush1.msra.mxu0 0.0
        %986 = vmatprep.subr.mxu0 0.0
        %987 = vmatpush1.msra.mxu0 0.0
        %988 = vmatprep.subr.mxu0 0.0
        %989 = vmatpush1.msra.mxu0 0.0
        %990 = vmatprep.subr.mxu0 0.0
        %991 = vmatpush1.msra.mxu0 0.0
        %992 = vmatprep.subr.mxu0 0.0
        %993 = vmatpush1.msra.mxu0 0.0
        %994 = vmatprep.subr.mxu0 0.0
        %995 = vmatpush1.msra.mxu0 0.0
        %996 = vmatprep.subr.mxu0 0.0
        %997 = vmatpush1.msra.mxu0 0.0
        %998 = vmatprep.subr.mxu0 0.0
        %999 = vmatpush1.msra.mxu0 0.0
        %1000 = vmatprep.subr.mxu0 0.0
        %1001 = vmatpush1.msra.mxu0 0.0
        %1002 = vmatprep.subr.mxu0 0.0
        %1003 = vmatpush1.msra.mxu0 0.0
        %1004 = vmatprep.subr.mxu0 0.0
        %1005 = vmatpush1.msra.mxu0 0.0
        %1006 = vmatprep.subr.mxu0 0.0
        %1007 = vmatpush1.msra.mxu0 0.0
        %1008 = vmatprep.subr.mxu0 0.0
        %1009 = vmatpush1.msra.mxu0 0.0
        %1010 = vmatprep.mubr.f32.mxu0 0.0
        %v1011 = vand.u32 %v859, 4294901760
        %1012 = vmatmul.mubr.f32.gmra.mrb[0].mxu0 %v1011
        %v1013 = vpop.f32.mrb[0].mxu0
        %v1014 = vadd.f32 %v938, %v1013
        %v1015 = vpop.f32.mrb[0].mxu0
        %1016 = vdwg.mxu0
        %1017 = vmatprep.subr.mxu0 0.0
        %v1018 = vand.u32 %v863, 4294901760
        %v1019 = vsub.f32 %v863, %v1018
        %1020 = vmatpush1.msra.mxu0 %v1019
        %1021 = vmatprep.subr.mxu0 0.0
        %1022 = vmatpush1.msra.mxu0 0.0
        %1023 = vmatprep.subr.mxu0 0.0
        %1024 = vmatpush1.msra.mxu0 0.0
        %1025 = vmatprep.subr.mxu0 0.0
        %1026 = vmatpush1.msra.mxu0 0.0
        %1027 = vmatprep.subr.mxu0 0.0
        %1028 = vmatpush1.msra.mxu0 0.0
        %1029 = vmatprep.subr.mxu0 0.0
        %1030 = vmatpush1.msra.mxu0 0.0
        %1031 = vmatprep.subr.mxu0 0.0
        %1032 = vmatpush1.msra.mxu0 0.0
        %1033 = vmatprep.subr.mxu0 0.0
        %1034 = vmatpush1.msra.mxu0 0.0
        %1035 = vmatprep.subr.mxu0 0.0
        %1036 = vmatpush1.msra.mxu0 0.0
        %1037 = vmatprep.subr.mxu0 0.0
        %1038 = vmatpush1.msra.mxu0 0.0
        %1039 = vmatprep.subr.mxu0 0.0
        %1040 = vmatpush1.msra.mxu0 0.0
        %1041 = vmatprep.subr.mxu0 0.0
        %1042 = vmatpush1.msra.mxu0 0.0
        %1043 = vmatprep.subr.mxu0 0.0
        %1044 = vmatpush1.msra.mxu0 0.0
        %1045 = vmatprep.subr.mxu0 0.0
        %1046 = vmatpush1.msra.mxu0 0.0
        %1047 = vmatprep.subr.mxu0 0.0
        %1048 = vmatpush1.msra.mxu0 0.0
        %1049 = vmatprep.subr.mxu0 0.0
        %1050 = vmatpush1.msra.mxu0 0.0
        %1051 = vmatprep.subr.mxu0 0.0
        %1052 = vmatpush1.msra.mxu0 0.0
        %1053 = vmatprep.subr.mxu0 0.0
        %1054 = vmatpush1.msra.mxu0 0.0
        %1055 = vmatprep.subr.mxu0 0.0
        %1056 = vmatpush1.msra.mxu0 0.0
        %1057 = vmatprep.subr.mxu0 0.0
        %1058 = vmatpush1.msra.mxu0 0.0
        %1059 = vmatprep.subr.mxu0 0.0
        %1060 = vmatpush1.msra.mxu0 0.0
        %1061 = vmatprep.subr.mxu0 0.0
        %1062 = vmatpush1.msra.mxu0 0.0
        %1063 = vmatprep.subr.mxu0 0.0
        %1064 = vmatpush1.msra.mxu0 0.0
        %1065 = vmatprep.subr.mxu0 0.0
        %1066 = vmatpush1.msra.mxu0 0.0
        %1067 = vmatprep.subr.mxu0 0.0
        %1068 = vmatpush1.msra.mxu0 0.0
        %1069 = vmatprep.subr.mxu0 0.0
        %1070 = vmatpush1.msra.mxu0 0.0
        %1071 = vmatprep.subr.mxu0 0.0
        %1072 = vmatpush1.msra.mxu0 0.0
        %1073 = vmatprep.subr.mxu0 0.0
        %1074 = vmatpush1.msra.mxu0 0.0
        %1075 = vmatprep.subr.mxu0 0.0
        %1076 = vmatpush1.msra.mxu0 0.0
        %1077 = vmatprep.subr.mxu0 0.0
        %1078 = vmatpush1.msra.mxu0 0.0
        %1079 = vmatprep.subr.mxu0 0.0
        %1080 = vmatpush1.msra.mxu0 0.0
        %1081 = vmatprep.subr.mxu0 0.0
        %1082 = vmatpush1.msra.mxu0 0.0
        %1083 = vmatprep.mubr.f32.mxu0 0.0
        %v1084 = vand.u32 %v859, 4294901760
        %v1085 = vsub.f32 %v859, %v1084
        %1086 = vmatmul.mubr.f32.gmra.mrb[0].mxu0 %v1085
        %v1087 = vpop.f32.mrb[0].mxu0
        %v1088 = vadd.f32 %v1014, %v1087
        %v1089 = vpop.f32.mrb[0].mxu0
        %1090 = vdwg.mxu0
        %1091 = vmatprep.subr.mxu0 0.0
        %v1092 = vand.u32 %v863, 4294901760
        %1093 = vmatpush1.msra.mxu0 %v1092
        %1094 = vmatprep.subr.mxu0 0.0
        %1095 = vmatpush1.msra.mxu0 0.0
        %1096 = vmatprep.subr.mxu0 0.0
        %1097 = vmatpush1.msra.mxu0 0.0
        %1098 = vmatprep.subr.mxu0 0.0
        %1099 = vmatpush1.msra.mxu0 0.0
        %1100 = vmatprep.subr.mxu0 0.0
        %1101 = vmatpush1.msra.mxu0 0.0
        %1102 = vmatprep.subr.mxu0 0.0
        %1103 = vmatpush1.msra.mxu0 0.0
        %1104 = vmatprep.subr.mxu0 0.0
        %1105 = vmatpush1.msra.mxu0 0.0
        %1106 = vmatprep.subr.mxu0 0.0
        %1107 = vmatpush1.msra.mxu0 0.0
        %1108 = vmatprep.subr.mxu0 0.0
        %1109 = vmatpush1.msra.mxu0 0.0
        %1110 = vmatprep.subr.mxu0 0.0
        %1111 = vmatpush1.msra.mxu0 0.0
        %1112 = vmatprep.subr.mxu0 0.0
        %1113 = vmatpush1.msra.mxu0 0.0
        %1114 = vmatprep.subr.mxu0 0.0
        %1115 = vmatpush1.msra.mxu0 0.0
        %1116 = vmatprep.subr.mxu0 0.0
        %1117 = vmatpush1.msra.mxu0 0.0
        %1118 = vmatprep.subr.mxu0 0.0
        %1119 = vmatpush1.msra.mxu0 0.0
        %1120 = vmatprep.subr.mxu0 0.0
        %1121 = vmatpush1.msra.mxu0 0.0
        %1122 = vmatprep.subr.mxu0 0.0
        %1123 = vmatpush1.msra.mxu0 0.0
        %1124 = vmatprep.subr.mxu0 0.0
        %1125 = vmatpush1.msra.mxu0 0.0
        %1126 = vmatprep.subr.mxu0 0.0
        %1127 = vmatpush1.msra.mxu0 0.0
        %1128 = vmatprep.subr.mxu0 0.0
        %1129 = vmatpush1.msra.mxu0 0.0
        %1130 = vmatprep.subr.mxu0 0.0
        %1131 = vmatpush1.msra.mxu0 0.0
        %1132 = vmatprep.subr.mxu0 0.0
        %1133 = vmatpush1.msra.mxu0 0.0
        %1134 = vmatprep.subr.mxu0 0.0
        %1135 = vmatpush1.msra.mxu0 0.0
        %1136 = vmatprep.subr.mxu0 0.0
        %1137 = vmatpush1.msra.mxu0 0.0
        %1138 = vmatprep.subr.mxu0 0.0
        %1139 = vmatpush1.msra.mxu0 0.0
        %1140 = vmatprep.subr.mxu0 0.0
        %1141 = vmatpush1.msra.mxu0 0.0
        %1142 = vmatprep.subr.mxu0 0.0
        %1143 = vmatpush1.msra.mxu0 0.0
        %1144 = vmatprep.subr.mxu0 0.0
        %1145 = vmatpush1.msra.mxu0 0.0
        %1146 = vmatprep.subr.mxu0 0.0
        %1147 = vmatpush1.msra.mxu0 0.0
        %1148 = vmatprep.subr.mxu0 0.0
        %1149 = vmatpush1.msra.mxu0 0.0
        %1150 = vmatprep.subr.mxu0 0.0
        %1151 = vmatpush1.msra.mxu0 0.0
        %1152 = vmatprep.subr.mxu0 0.0
        %1153 = vmatpush1.msra.mxu0 0.0
        %1154 = vmatprep.subr.mxu0 0.0
        %1155 = vmatpush1.msra.mxu0 0.0
        %1156 = vmatprep.mubr.f32.mxu0 0.0
        %v1157 = vand.u32 %v859, 4294901760
        %v1158 = vsub.f32 %v859, %v1157
        %v1159 = vand.u32 %v1158, 4294901760
        %1160 = vmatmul.mubr.f32.gmra.mrb[0].mxu0 %v1159
        %v1161 = vpop.f32.mrb[0].mxu0
        %v1162 = vadd.f32 %v1088, %v1161
        %v1163 = vpop.f32.mrb[0].mxu0
        %1164 = vdwg.mxu0
        %1165 = vmatprep.subr.mxu0 0.0
        %v1166 = vand.u32 %v863, 4294901760
        %v1167 = vsub.f32 %v863, %v1166
        %v1168 = vand.u32 %v1167, 4294901760
        %1169 = vmatpush1.msra.mxu0 %v1168
        %1170 = vmatprep.subr.mxu0 0.0
        %1171 = vmatpush1.msra.mxu0 0.0
        %1172 = vmatprep.subr.mxu0 0.0
        %1173 = vmatpush1.msra.mxu0 0.0
        %1174 = vmatprep.subr.mxu0 0.0
        %1175 = vmatpush1.msra.mxu0 0.0
        %1176 = vmatprep.subr.mxu0 0.0
        %1177 = vmatpush1.msra.mxu0 0.0
        %1178 = vmatprep.subr.mxu0 0.0
        %1179 = vmatpush1.msra.mxu0 0.0
        %1180 = vmatprep.subr.mxu0 0.0
        %1181 = vmatpush1.msra.mxu0 0.0
        %1182 = vmatprep.subr.mxu0 0.0
        %1183 = vmatpush1.msra.mxu0 0.0
        %1184 = vmatprep.subr.mxu0 0.0
        %1185 = vmatpush1.msra.mxu0 0.0
        %1186 = vmatprep.subr.mxu0 0.0
        %1187 = vmatpush1.msra.mxu0 0.0
        %1188 = vmatprep.subr.mxu0 0.0
        %1189 = vmatpush1.msra.mxu0 0.0
        %1190 = vmatprep.subr.mxu0 0.0
        %1191 = vmatpush1.msra.mxu0 0.0
        %1192 = vmatprep.subr.mxu0 0.0
        %1193 = vmatpush1.msra.mxu0 0.0
        %1194 = vmatprep.subr.mxu0 0.0
        %1195 = vmatpush1.msra.mxu0 0.0
        %1196 = vmatprep.subr.mxu0 0.0
        %1197 = vmatpush1.msra.mxu0 0.0
        %1198 = vmatprep.subr.mxu0 0.0
        %1199 = vmatpush1.msra.mxu0 0.0
        %1200 = vmatprep.subr.mxu0 0.0
        %1201 = vmatpush1.msra.mxu0 0.0
        %1202 = vmatprep.subr.mxu0 0.0
        %1203 = vmatpush1.msra.mxu0 0.0
        %1204 = vmatprep.subr.mxu0 0.0
        %1205 = vmatpush1.msra.mxu0 0.0
        %1206 = vmatprep.subr.mxu0 0.0
        %1207 = vmatpush1.msra.mxu0 0.0
        %1208 = vmatprep.subr.mxu0 0.0
        %1209 = vmatpush1.msra.mxu0 0.0
        %1210 = vmatprep.subr.mxu0 0.0
        %1211 = vmatpush1.msra.mxu0 0.0
        %1212 = vmatprep.subr.mxu0 0.0
        %1213 = vmatpush1.msra.mxu0 0.0
        %1214 = vmatprep.subr.mxu0 0.0
        %1215 = vmatpush1.msra.mxu0 0.0
        %1216 = vmatprep.subr.mxu0 0.0
        %1217 = vmatpush1.msra.mxu0 0.0
        %1218 = vmatprep.subr.mxu0 0.0
        %1219 = vmatpush1.msra.mxu0 0.0
        %1220 = vmatprep.subr.mxu0 0.0
        %1221 = vmatpush1.msra.mxu0 0.0
        %1222 = vmatprep.subr.mxu0 0.0
        %1223 = vmatpush1.msra.mxu0 0.0
        %1224 = vmatprep.subr.mxu0 0.0
        %1225 = vmatpush1.msra.mxu0 0.0
        %1226 = vmatprep.subr.mxu0 0.0
        %1227 = vmatpush1.msra.mxu0 0.0
        %1228 = vmatprep.subr.mxu0 0.0
        %1229 = vmatpush1.msra.mxu0 0.0
        %1230 = vmatprep.subr.mxu0 0.0
        %1231 = vmatpush1.msra.mxu0 0.0
        %1232 = vmatprep.mubr.f32.mxu0 0.0
        %v1233 = vand.u32 %v859, 4294901760
        %1234 = vmatmul.mubr.f32.gmra.mrb[0].mxu0 %v1233
        %v1235 = vpop.f32.mrb[0].mxu0
        %v1236 = vadd.f32 %v1162, %v1235
        %v1237 = vpop.f32.mrb[0].mxu0
        %1238 = vdwg.mxu0
        %1239 = vmatprep.subr.mxu0 0.0
        %v1240 = vand.u32 %v863, 4294901760
        %1241 = vmatpush1.msra.mxu0 %v1240
        %1242 = vmatprep.subr.mxu0 0.0
        %1243 = vmatpush1.msra.mxu0 0.0
        %1244 = vmatprep.subr.mxu0 0.0
        %1245 = vmatpush1.msra.mxu0 0.0
        %1246 = vmatprep.subr.mxu0 0.0
        %1247 = vmatpush1.msra.mxu0 0.0
        %1248 = vmatprep.subr.mxu0 0.0
        %1249 = vmatpush1.msra.mxu0 0.0
        %1250 = vmatprep.subr.mxu0 0.0
        %1251 = vmatpush1.msra.mxu0 0.0
        %1252 = vmatprep.subr.mxu0 0.0
        %1253 = vmatpush1.msra.mxu0 0.0
        %1254 = vmatprep.subr.mxu0 0.0
        %1255 = vmatpush1.msra.mxu0 0.0
        %1256 = vmatprep.subr.mxu0 0.0
        %1257 = vmatpush1.msra.mxu0 0.0
        %1258 = vmatprep.subr.mxu0 0.0
        %1259 = vmatpush1.msra.mxu0 0.0
        %1260 = vmatprep.subr.mxu0 0.0
        %1261 = vmatpush1.msra.mxu0 0.0
        %1262 = vmatprep.subr.mxu0 0.0
        %1263 = vmatpush1.msra.mxu0 0.0
        %1264 = vmatprep.subr.mxu0 0.0
        %1265 = vmatpush1.msra.mxu0 0.0
        %1266 = vmatprep.subr.mxu0 0.0
        %1267 = vmatpush1.msra.mxu0 0.0
        %1268 = vmatprep.subr.mxu0 0.0
        %1269 = vmatpush1.msra.mxu0 0.0
        %1270 = vmatprep.subr.mxu0 0.0
        %1271 = vmatpush1.msra.mxu0 0.0
        %1272 = vmatprep.subr.mxu0 0.0
        %1273 = vmatpush1.msra.mxu0 0.0
        %1274 = vmatprep.subr.mxu0 0.0
        %1275 = vmatpush1.msra.mxu0 0.0
        %1276 = vmatprep.subr.mxu0 0.0
        %1277 = vmatpush1.msra.mxu0 0.0
        %1278 = vmatprep.subr.mxu0 0.0
        %1279 = vmatpush1.msra.mxu0 0.0
        %1280 = vmatprep.subr.mxu0 0.0
        %1281 = vmatpush1.msra.mxu0 0.0
        %1282 = vmatprep.subr.mxu0 0.0
        %1283 = vmatpush1.msra.mxu0 0.0
        %1284 = vmatprep.subr.mxu0 0.0
        %1285 = vmatpush1.msra.mxu0 0.0
        %1286 = vmatprep.subr.mxu0 0.0
        %1287 = vmatpush1.msra.mxu0 0.0
        %1288 = vmatprep.subr.mxu0 0.0
        %1289 = vmatpush1.msra.mxu0 0.0
        %1290 = vmatprep.subr.mxu0 0.0
        %1291 = vmatpush1.msra.mxu0 0.0
        %1292 = vmatprep.subr.mxu0 0.0
        %1293 = vmatpush1.msra.mxu0 0.0
        %1294 = vmatprep.subr.mxu0 0.0
        %1295 = vmatpush1.msra.mxu0 0.0
        %1296 = vmatprep.subr.mxu0 0.0
        %1297 = vmatpush1.msra.mxu0 0.0
        %1298 = vmatprep.subr.mxu0 0.0
        %1299 = vmatpush1.msra.mxu0 0.0
        %1300 = vmatprep.subr.mxu0 0.0
        %1301 = vmatpush1.msra.mxu0 0.0
        %1302 = vmatprep.subr.mxu0 0.0
        %1303 = vmatpush1.msra.mxu0 0.0
        %1304 = vmatprep.mubr.f32.mxu0 0.0
        %v1305 = vand.u32 %v859, 4294901760
        %1306 = vmatmul.mubr.f32.gmra.mrb[0].mxu0 %v1305
        %v1307 = vpop.f32.mrb[0].mxu0
        %v1308 = vadd.f32 %v1236, %v1307
        %v1309 = vpop.f32.mrb[0].mxu0
        %1310 = vdwg.mxu0
        %1311 = vst [vmem:[%s313] sm:$0xff] %v846
        %1312 = vst [vmem:[%s306] sm:$0xff] %v1308
        %v1313 = vld [vmem:[%s4] sm:$0xf]
        %v1314 = vld [vmem:[%s5] sm:$0xff]
        %v1315 = vld [vmem:[%s5 + $0x8] sm:$0xff]
        %v1316 = vld [vmem:[%s5 + $0x10] sm:$0xff]
        %1317 = vmatprep.subr.mxu0 0.0
        %v1318 = vand.u32 %v1314, 4294901760
        %1319 = vmatpush1.msra.mxu0 %v1318
        %1320 = vmatprep.subr.mxu0 0.0
        %v1321 = vand.u32 %v1315, 4294901760
        %1322 = vmatpush1.msra.mxu0 %v1321
        %1323 = vmatprep.subr.mxu0 0.0
        %v1324 = vand.u32 %v1316, 4294901760
        %1325 = vmatpush1.msra.mxu0 %v1324
        %1326 = vmatprep.subr.mxu0 0.0
        %1327 = vmatpush1.msra.mxu0 0.0
        %1328 = vmatprep.subr.mxu0 0.0
        %1329 = vmatpush1.msra.mxu0 0.0
        %1330 = vmatprep.subr.mxu0 0.0
        %1331 = vmatpush1.msra.mxu0 0.0
        %1332 = vmatprep.subr.mxu0 0.0
        %1333 = vmatpush1.msra.mxu0 0.0
        %1334 = vmatprep.subr.mxu0 0.0
        %1335 = vmatpush1.msra.mxu0 0.0
        %1336 = vmatprep.subr.mxu0 0.0
        %1337 = vmatpush1.msra.mxu0 0.0
        %1338 = vmatprep.subr.mxu0 0.0
        %1339 = vmatpush1.msra.mxu0 0.0
        %1340 = vmatprep.subr.mxu0 0.0
        %1341 = vmatpush1.msra.mxu0 0.0
        %1342 = vmatprep.subr.mxu0 0.0
        %1343 = vmatpush1.msra.mxu0 0.0
        %1344 = vmatprep.subr.mxu0 0.0
        %1345 = vmatpush1.msra.mxu0 0.0
        %1346 = vmatprep.subr.mxu0 0.0
        %1347 = vmatpush1.msra.mxu0 0.0
        %1348 = vmatprep.subr.mxu0 0.0
        %1349 = vmatpush1.msra.mxu0 0.0
        %1350 = vmatprep.subr.mxu0 0.0
        %1351 = vmatpush1.msra.mxu0 0.0
        %1352 = vmatprep.subr.mxu0 0.0
        %1353 = vmatpush1.msra.mxu0 0.0
        %1354 = vmatprep.subr.mxu0 0.0
        %1355 = vmatpush1.msra.mxu0 0.0
        %1356 = vmatprep.subr.mxu0 0.0
        %1357 = vmatpush1.msra.mxu0 0.0
        %1358 = vmatprep.subr.mxu0 0.0
        %1359 = vmatpush1.msra.mxu0 0.0
        %1360 = vmatprep.subr.mxu0 0.0
        %1361 = vmatpush1.msra.mxu0 0.0
        %1362 = vmatprep.subr.mxu0 0.0
        %1363 = vmatpush1.msra.mxu0 0.0
        %1364 = vmatprep.subr.mxu0 0.0
        %1365 = vmatpush1.msra.mxu0 0.0
        %1366 = vmatprep.subr.mxu0 0.0
        %1367 = vmatpush1.msra.mxu0 0.0
        %1368 = vmatprep.subr.mxu0 0.0
        %1369 = vmatpush1.msra.mxu0 0.0
        %1370 = vmatprep.subr.mxu0 0.0
        %1371 = vmatpush1.msra.mxu0 0.0
        %1372 = vmatprep.subr.mxu0 0.0
        %1373 = vmatpush1.msra.mxu0 0.0
        %1374 = vmatprep.subr.mxu0 0.0
        %1375 = vmatpush1.msra.mxu0 0.0
        %1376 = vmatprep.subr.mxu0 0.0
        %1377 = vmatpush1.msra.mxu0 0.0
        %1378 = vmatprep.subr.mxu0 0.0
        %1379 = vmatpush1.msra.mxu0 0.0
        %1380 = vmatprep.subr.mxu0 0.0
        %1381 = vmatpush1.msra.mxu0 0.0
        %1382 = vmatprep.subr.mxu0 0.0
        %1383 = vmatpush1.msra.mxu0 0.0
        %1384 = vmatprep.mubr.f32.mxu0 0.0
        %v1385 = vand.u32 %v375, 4294901760
        %v1386 = vsub.f32 %v375, %v1385
        %v1387 = vand.u32 %v1386, 4294901760
        %v1388 = vsub.f32 %v1386, %v1387
        %v1389 = vand.u32 %v1388, 4294901760
        %1390 = vmatmul.mubr.f32.gmra.mrb[0].mxu0 %v1389
        %v1391 = vpop.f32.mrb[0].mxu0
        %v1392 = vadd.f32 0.0, %v1391
        %v1393 = vpop.f32.mrb[0].mxu0
        %1394 = vdwg.mxu0
        %1395 = vmatprep.subr.mxu0 0.0
        %v1396 = vand.u32 %v1314, 4294901760
        %v1397 = vsub.f32 %v1314, %v1396
        %v1398 = vand.u32 %v1397, 4294901760
        %v1399 = vsub.f32 %v1397, %v1398
        %v1400 = vand.u32 %v1399, 4294901760
        %1401 = vmatpush1.msra.mxu0 %v1400
        %1402 = vmatprep.subr.mxu0 0.0
        %v1403 = vand.u32 %v1315, 4294901760
        %v1404 = vsub.f32 %v1315, %v1403
        %v1405 = vand.u32 %v1404, 4294901760
        %v1406 = vsub.f32 %v1404, %v1405
        %v1407 = vand.u32 %v1406, 4294901760
        %1408 = vmatpush1.msra.mxu0 %v1407
        %1409 = vmatprep.subr.mxu0 0.0
        %v1410 = vand.u32 %v1316, 4294901760
        %v1411 = vsub.f32 %v1316, %v1410
        %v1412 = vand.u32 %v1411, 4294901760
        %v1413 = vsub.f32 %v1411, %v1412
        %v1414 = vand.u32 %v1413, 4294901760
        %1415 = vmatpush1.msra.mxu0 %v1414
        %1416 = vmatprep.subr.mxu0 0.0
        %1417 = vmatpush1.msra.mxu0 0.0
        %1418 = vmatprep.subr.mxu0 0.0
        %1419 = vmatpush1.msra.mxu0 0.0
        %1420 = vmatprep.subr.mxu0 0.0
        %1421 = vmatpush1.msra.mxu0 0.0
        %1422 = vmatprep.subr.mxu0 0.0
        %1423 = vmatpush1.msra.mxu0 0.0
        %1424 = vmatprep.subr.mxu0 0.0
        %1425 = vmatpush1.msra.mxu0 0.0
        %1426 = vmatprep.subr.mxu0 0.0
        %1427 = vmatpush1.msra.mxu0 0.0
        %1428 = vmatprep.subr.mxu0 0.0
        %1429 = vmatpush1.msra.mxu0 0.0
        %1430 = vmatprep.subr.mxu0 0.0
        %1431 = vmatpush1.msra.mxu0 0.0
        %1432 = vmatprep.subr.mxu0 0.0
        %1433 = vmatpush1.msra.mxu0 0.0
        %1434 = vmatprep.subr.mxu0 0.0
        %1435 = vmatpush1.msra.mxu0 0.0
        %1436 = vmatprep.subr.mxu0 0.0
        %1437 = vmatpush1.msra.mxu0 0.0
        %1438 = vmatprep.subr.mxu0 0.0
        %1439 = vmatpush1.msra.mxu0 0.0
        %1440 = vmatprep.subr.mxu0 0.0
        %1441 = vmatpush1.msra.mxu0 0.0
        %1442 = vmatprep.subr.mxu0 0.0
        %1443 = vmatpush1.msra.mxu0 0.0
        %1444 = vmatprep.subr.mxu0 0.0
        %1445 = vmatpush1.msra.mxu0 0.0
        %1446 = vmatprep.subr.mxu0 0.0
        %1447 = vmatpush1.msra.mxu0 0.0
        %1448 = vmatprep.subr.mxu0 0.0
        %1449 = vmatpush1.msra.mxu0 0.0
        %1450 = vmatprep.subr.mxu0 0.0
        %1451 = vmatpush1.msra.mxu0 0.0
        %1452 = vmatprep.subr.mxu0 0.0
        %1453 = vmatpush1.msra.mxu0 0.0
        %1454 = vmatprep.subr.mxu0 0.0
        %1455 = vmatpush1.msra.mxu0 0.0
        %1456 = vmatprep.subr.mxu0 0.0
        %1457 = vmatpush1.msra.mxu0 0.0
        %1458 = vmatprep.subr.mxu0 0.0
        %1459 = vmatpush1.msra.mxu0 0.0
        %1460 = vmatprep.subr.mxu0 0.0
        %1461 = vmatpush1.msra.mxu0 0.0
        %1462 = vmatprep.subr.mxu0 0.0
        %1463 = vmatpush1.msra.mxu0 0.0
        %1464 = vmatprep.subr.mxu0 0.0
        %1465 = vmatpush1.msra.mxu0 0.0
        %1466 = vmatprep.subr.mxu0 0.0
        %1467 = vmatpush1.msra.mxu0 0.0
        %1468 = vmatprep.subr.mxu0 0.0
        %1469 = vmatpush1.msra.mxu0 0.0
        %1470 = vmatprep.subr.mxu0 0.0
        %1471 = vmatpush1.msra.mxu0 0.0
        %1472 = vmatprep.subr.mxu0 0.0
        %1473 = vmatpush1.msra.mxu0 0.0
        %1474 = vmatprep.mubr.f32.mxu0 0.0
        %v1475 = vand.u32 %v375, 4294901760
        %1476 = vmatmul.mubr.f32.gmra.mrb[0].mxu0 %v1475
        %v1477 = vpop.f32.mrb[0].mxu0
        %v1478 = vadd.f32 %v1392, %v1477
        %v1479 = vpop.f32.mrb[0].mxu0
        %1480 = vdwg.mxu0
        %1481 = vmatprep.subr.mxu0 0.0
        %v1482 = vand.u32 %v1314, 4294901760
        %v1483 = vsub.f32 %v1314, %v1482
        %1484 = vmatpush1.msra.mxu0 %v1483
        %1485 = vmatprep.subr.mxu0 0.0
        %v1486 = vand.u32 %v1315, 4294901760
        %v1487 = vsub.f32 %v1315, %v1486
        %1488 = vmatpush1.msra.mxu0 %v1487
        %1489 = vmatprep.subr.mxu0 0.0
        %v1490 = vand.u32 %v1316, 4294901760
        %v1491 = vsub.f32 %v1316, %v1490
        %1492 = vmatpush1.msra.mxu0 %v1491
        %1493 = vmatprep.subr.mxu0 0.0
        %1494 = vmatpush1.msra.mxu0 0.0
        %1495 = vmatprep.subr.mxu0 0.0
        %1496 = vmatpush1.msra.mxu0 0.0
        %1497 = vmatprep.subr.mxu0 0.0
        %1498 = vmatpush1.msra.mxu0 0.0
        %1499 = vmatprep.subr.mxu0 0.0
        %1500 = vmatpush1.msra.mxu0 0.0
        %1501 = vmatprep.subr.mxu0 0.0
        %1502 = vmatpush1.msra.mxu0 0.0
        %1503 = vmatprep.subr.mxu0 0.0
        %1504 = vmatpush1.msra.mxu0 0.0
        %1505 = vmatprep.subr.mxu0 0.0
        %1506 = vmatpush1.msra.mxu0 0.0
        %1507 = vmatprep.subr.mxu0 0.0
        %1508 = vmatpush1.msra.mxu0 0.0
        %1509 = vmatprep.subr.mxu0 0.0
        %1510 = vmatpush1.msra.mxu0 0.0
        %1511 = vmatprep.subr.mxu0 0.0
        %1512 = vmatpush1.msra.mxu0 0.0
        %1513 = vmatprep.subr.mxu0 0.0
        %1514 = vmatpush1.msra.mxu0 0.0
        %1515 = vmatprep.subr.mxu0 0.0
        %1516 = vmatpush1.msra.mxu0 0.0
        %1517 = vmatprep.subr.mxu0 0.0
        %1518 = vmatpush1.msra.mxu0 0.0
        %1519 = vmatprep.subr.mxu0 0.0
        %1520 = vmatpush1.msra.mxu0 0.0
        %1521 = vmatprep.subr.mxu0 0.0
        %1522 = vmatpush1.msra.mxu0 0.0
        %1523 = vmatprep.subr.mxu0 0.0
        %1524 = vmatpush1.msra.mxu0 0.0
        %1525 = vmatprep.subr.mxu0 0.0
        %1526 = vmatpush1.msra.mxu0 0.0
        %1527 = vmatprep.subr.mxu0 0.0
        %1528 = vmatpush1.msra.mxu0 0.0
        %1529 = vmatprep.subr.mxu0 0.0
        %1530 = vmatpush1.msra.mxu0 0.0
        %1531 = vmatprep.subr.mxu0 0.0
        %1532 = vmatpush1.msra.mxu0 0.0
        %1533 = vmatprep.subr.mxu0 0.0
        %1534 = vmatpush1.msra.mxu0 0.0
        %1535 = vmatprep.subr.mxu0 0.0
        %1536 = vmatpush1.msra.mxu0 0.0
        %1537 = vmatprep.subr.mxu0 0.0
        %1538 = vmatpush1.msra.mxu0 0.0
        %1539 = vmatprep.subr.mxu0 0.0
        %1540 = vmatpush1.msra.mxu0 0.0
        %1541 = vmatprep.subr.mxu0 0.0
        %1542 = vmatpush1.msra.mxu0 0.0
        %1543 = vmatprep.subr.mxu0 0.0
        %1544 = vmatpush1.msra.mxu0 0.0
        %1545 = vmatprep.subr.mxu0 0.0
        %1546 = vmatpush1.msra.mxu0 0.0
        %1547 = vmatprep.subr.mxu0 0.0
        %1548 = vmatpush1.msra.mxu0 0.0
        %1549 = vmatprep.subr.mxu0 0.0
        %1550 = vmatpush1.msra.mxu0 0.0
        %1551 = vmatprep.mubr.f32.mxu0 0.0
        %v1552 = vand.u32 %v375, 4294901760
        %v1553 = vsub.f32 %v375, %v1552
        %1554 = vmatmul.mubr.f32.gmra.mrb[0].mxu0 %v1553
        %v1555 = vpop.f32.mrb[0].mxu0
        %v1556 = vadd.f32 %v1478, %v1555
        %v1557 = vpop.f32.mrb[0].mxu0
        %1558 = vdwg.mxu0
        %1559 = vmatprep.subr.mxu0 0.0
        %v1560 = vand.u32 %v1314, 4294901760
        %1561 = vmatpush1.msra.mxu0 %v1560
        %1562 = vmatprep.subr.mxu0 0.0
        %v1563 = vand.u32 %v1315, 4294901760
        %1564 = vmatpush1.msra.mxu0 %v1563
        %1565 = vmatprep.subr.mxu0 0.0
        %v1566 = vand.u32 %v1316, 4294901760
        %1567 = vmatpush1.msra.mxu0 %v1566
        %1568 = vmatprep.subr.mxu0 0.0
        %1569 = vmatpush1.msra.mxu0 0.0
        %1570 = vmatprep.subr.mxu0 0.0
        %1571 = vmatpush1.msra.mxu0 0.0
        %1572 = vmatprep.subr.mxu0 0.0
        %1573 = vmatpush1.msra.mxu0 0.0
        %1574 = vmatprep.subr.mxu0 0.0
        %1575 = vmatpush1.msra.mxu0 0.0
        %1576 = vmatprep.subr.mxu0 0.0
        %1577 = vmatpush1.msra.mxu0 0.0
        %1578 = vmatprep.subr.mxu0 0.0
        %1579 = vmatpush1.msra.mxu0 0.0
        %1580 = vmatprep.subr.mxu0 0.0
        %1581 = vmatpush1.msra.mxu0 0.0
        %1582 = vmatprep.subr.mxu0 0.0
        %1583 = vmatpush1.msra.mxu0 0.0
        %1584 = vmatprep.subr.mxu0 0.0
        %1585 = vmatpush1.msra.mxu0 0.0
        %1586 = vmatprep.subr.mxu0 0.0
        %1587 = vmatpush1.msra.mxu0 0.0
        %1588 = vmatprep.subr.mxu0 0.0
        %1589 = vmatpush1.msra.mxu0 0.0
        %1590 = vmatprep.subr.mxu0 0.0
        %1591 = vmatpush1.msra.mxu0 0.0
        %1592 = vmatprep.subr.mxu0 0.0
        %1593 = vmatpush1.msra.mxu0 0.0
        %1594 = vmatprep.subr.mxu0 0.0
        %1595 = vmatpush1.msra.mxu0 0.0
        %1596 = vmatprep.subr.mxu0 0.0
        %1597 = vmatpush1.msra.mxu0 0.0
        %1598 = vmatprep.subr.mxu0 0.0
        %1599 = vmatpush1.msra.mxu0 0.0
        %1600 = vmatprep.subr.mxu0 0.0
        %1601 = vmatpush1.msra.mxu0 0.0
        %1602 = vmatprep.subr.mxu0 0.0
        %1603 = vmatpush1.msra.mxu0 0.0
        %1604 = vmatprep.subr.mxu0 0.0
        %1605 = vmatpush1.msra.mxu0 0.0
        %1606 = vmatprep.subr.mxu0 0.0
        %1607 = vmatpush1.msra.mxu0 0.0
        %1608 = vmatprep.subr.mxu0 0.0
        %1609 = vmatpush1.msra.mxu0 0.0
        %1610 = vmatprep.subr.mxu0 0.0
        %1611 = vmatpush1.msra.mxu0 0.0
        %1612 = vmatprep.subr.mxu0 0.0
        %1613 = vmatpush1.msra.mxu0 0.0
        %1614 = vmatprep.subr.mxu0 0.0
        %1615 = vmatpush1.msra.mxu0 0.0
        %1616 = vmatprep.subr.mxu0 0.0
        %1617 = vmatpush1.msra.mxu0 0.0
        %1618 = vmatprep.subr.mxu0 0.0
        %1619 = vmatpush1.msra.mxu0 0.0
        %1620 = vmatprep.subr.mxu0 0.0
        %1621 = vmatpush1.msra.mxu0 0.0
        %1622 = vmatprep.subr.mxu0 0.0
        %1623 = vmatpush1.msra.mxu0 0.0
        %1624 = vmatprep.subr.mxu0 0.0
        %1625 = vmatpush1.msra.mxu0 0.0
        %1626 = vmatprep.mubr.f32.mxu0 0.0
        %v1627 = vand.u32 %v375, 4294901760
        %v1628 = vsub.f32 %v375, %v1627
        %v1629 = vand.u32 %v1628, 4294901760
        %1630 = vmatmul.mubr.f32.gmra.mrb[0].mxu0 %v1629
        %v1631 = vpop.f32.mrb[0].mxu0
        %v1632 = vadd.f32 %v1556, %v1631
        %v1633 = vpop.f32.mrb[0].mxu0
        %1634 = vdwg.mxu0
        %1635 = vmatprep.subr.mxu0 0.0
        %v1636 = vand.u32 %v1314, 4294901760
        %v1637 = vsub.f32 %v1314, %v1636
        %v1638 = vand.u32 %v1637, 4294901760
        %1639 = vmatpush1.msra.mxu0 %v1638
        %1640 = vmatprep.subr.mxu0 0.0
        %v1641 = vand.u32 %v1315, 4294901760
        %v1642 = vsub.f32 %v1315, %v1641
        %v1643 = vand.u32 %v1642, 4294901760
        %1644 = vmatpush1.msra.mxu0 %v1643
        %1645 = vmatprep.subr.mxu0 0.0
        %v1646 = vand.u32 %v1316, 4294901760
        %v1647 = vsub.f32 %v1316, %v1646
        %v1648 = vand.u32 %v1647, 4294901760
        %1649 = vmatpush1.msra.mxu0 %v1648
        %1650 = vmatprep.subr.mxu0 0.0
        %1651 = vmatpush1.msra.mxu0 0.0
        %1652 = vmatprep.subr.mxu0 0.0
        %1653 = vmatpush1.msra.mxu0 0.0
        %1654 = vmatprep.subr.mxu0 0.0
        %1655 = vmatpush1.msra.mxu0 0.0
        %1656 = vmatprep.subr.mxu0 0.0
        %1657 = vmatpush1.msra.mxu0 0.0
        %1658 = vmatprep.subr.mxu0 0.0
        %1659 = vmatpush1.msra.mxu0 0.0
        %1660 = vmatprep.subr.mxu0 0.0
        %1661 = vmatpush1.msra.mxu0 0.0
        %1662 = vmatprep.subr.mxu0 0.0
        %1663 = vmatpush1.msra.mxu0 0.0
        %1664 = vmatprep.subr.mxu0 0.0
        %1665 = vmatpush1.msra.mxu0 0.0
        %1666 = vmatprep.subr.mxu0 0.0
        %1667 = vmatpush1.msra.mxu0 0.0
        %1668 = vmatprep.subr.mxu0 0.0
        %1669 = vmatpush1.msra.mxu0 0.0
        %1670 = vmatprep.subr.mxu0 0.0
        %1671 = vmatpush1.msra.mxu0 0.0
        %1672 = vmatprep.subr.mxu0 0.0
        %1673 = vmatpush1.msra.mxu0 0.0
        %1674 = vmatprep.subr.mxu0 0.0
        %1675 = vmatpush1.msra.mxu0 0.0
        %1676 = vmatprep.subr.mxu0 0.0
        %1677 = vmatpush1.msra.mxu0 0.0
        %1678 = vmatprep.subr.mxu0 0.0
        %1679 = vmatpush1.msra.mxu0 0.0
        %1680 = vmatprep.subr.mxu0 0.0
        %1681 = vmatpush1.msra.mxu0 0.0
        %1682 = vmatprep.subr.mxu0 0.0
        %1683 = vmatpush1.msra.mxu0 0.0
        %1684 = vmatprep.subr.mxu0 0.0
        %1685 = vmatpush1.msra.mxu0 0.0
        %1686 = vmatprep.subr.mxu0 0.0
        %1687 = vmatpush1.msra.mxu0 0.0
        %1688 = vmatprep.subr.mxu0 0.0
        %1689 = vmatpush1.msra.mxu0 0.0
        %1690 = vmatprep.subr.mxu0 0.0
        %1691 = vmatpush1.msra.mxu0 0.0
        %1692 = vmatprep.subr.mxu0 0.0
        %1693 = vmatpush1.msra.mxu0 0.0
        %1694 = vmatprep.subr.mxu0 0.0
        %1695 = vmatpush1.msra.mxu0 0.0
        %1696 = vmatprep.subr.mxu0 0.0
        %1697 = vmatpush1.msra.mxu0 0.0
        %1698 = vmatprep.subr.mxu0 0.0
        %1699 = vmatpush1.msra.mxu0 0.0
        %1700 = vmatprep.subr.mxu0 0.0
        %1701 = vmatpush1.msra.mxu0 0.0
        %1702 = vmatprep.subr.mxu0 0.0
        %1703 = vmatpush1.msra.mxu0 0.0
        %1704 = vmatprep.subr.mxu0 0.0
        %1705 = vmatpush1.msra.mxu0 0.0
        %1706 = vmatprep.subr.mxu0 0.0
        %1707 = vmatpush1.msra.mxu0 0.0
        %1708 = vmatprep.mubr.f32.mxu0 0.0
        %v1709 = vand.u32 %v375, 4294901760
        %1710 = vmatmul.mubr.f32.gmra.mrb[0].mxu0 %v1709
        %v1711 = vpop.f32.mrb[0].mxu0
        %v1712 = vadd.f32 %v1632, %v1711
        %v1713 = vpop.f32.mrb[0].mxu0
        %1714 = vdwg.mxu0
        %1715 = vmatprep.subr.mxu0 0.0
        %v1716 = vand.u32 %v1314, 4294901760
        %1717 = vmatpush1.msra.mxu0 %v1716
        %1718 = vmatprep.subr.mxu0 0.0
        %v1719 = vand.u32 %v1315, 4294901760
        %1720 = vmatpush1.msra.mxu0 %v1719
        %1721 = vmatprep.subr.mxu0 0.0
        %v1722 = vand.u32 %v1316, 4294901760
        %1723 = vmatpush1.msra.mxu0 %v1722
        %1724 = vmatprep.subr.mxu0 0.0
        %1725 = vmatpush1.msra.mxu0 0.0
        %1726 = vmatprep.subr.mxu0 0.0
        %1727 = vmatpush1.msra.mxu0 0.0
        %1728 = vmatprep.subr.mxu0 0.0
        %1729 = vmatpush1.msra.mxu0 0.0
        %1730 = vmatprep.subr.mxu0 0.0
        %1731 = vmatpush1.msra.mxu0 0.0
        %1732 = vmatprep.subr.mxu0 0.0
        %1733 = vmatpush1.msra.mxu0 0.0
        %1734 = vmatprep.subr.mxu0 0.0
        %1735 = vmatpush1.msra.mxu0 0.0
        %1736 = vmatprep.subr.mxu0 0.0
        %1737 = vmatpush1.msra.mxu0 0.0
        %1738 = vmatprep.subr.mxu0 0.0
        %1739 = vmatpush1.msra.mxu0 0.0
        %1740 = vmatprep.subr.mxu0 0.0
        %1741 = vmatpush1.msra.mxu0 0.0
        %1742 = vmatprep.subr.mxu0 0.0
        %1743 = vmatpush1.msra.mxu0 0.0
        %1744 = vmatprep.subr.mxu0 0.0
        %1745 = vmatpush1.msra.mxu0 0.0
        %1746 = vmatprep.subr.mxu0 0.0
        %1747 = vmatpush1.msra.mxu0 0.0
        %1748 = vmatprep.subr.mxu0 0.0
        %1749 = vmatpush1.msra.mxu0 0.0
        %1750 = vmatprep.subr.mxu0 0.0
        %1751 = vmatpush1.msra.mxu0 0.0
        %1752 = vmatprep.subr.mxu0 0.0
        %1753 = vmatpush1.msra.mxu0 0.0
        %1754 = vmatprep.subr.mxu0 0.0
        %1755 = vmatpush1.msra.mxu0 0.0
        %1756 = vmatprep.subr.mxu0 0.0
        %1757 = vmatpush1.msra.mxu0 0.0
        %1758 = vmatprep.subr.mxu0 0.0
        %1759 = vmatpush1.msra.mxu0 0.0
        %1760 = vmatprep.subr.mxu0 0.0
        %1761 = vmatpush1.msra.mxu0 0.0
        %1762 = vmatprep.subr.mxu0 0.0
        %1763 = vmatpush1.msra.mxu0 0.0
        %1764 = vmatprep.subr.mxu0 0.0
        %1765 = vmatpush1.msra.mxu0 0.0
        %1766 = vmatprep.subr.mxu0 0.0
        %1767 = vmatpush1.msra.mxu0 0.0
        %1768 = vmatprep.subr.mxu0 0.0
        %1769 = vmatpush1.msra.mxu0 0.0
        %1770 = vmatprep.subr.mxu0 0.0
        %1771 = vmatpush1.msra.mxu0 0.0
        %1772 = vmatprep.subr.mxu0 0.0
        %1773 = vmatpush1.msra.mxu0 0.0
        %1774 = vmatprep.subr.mxu0 0.0
        %1775 = vmatpush1.msra.mxu0 0.0
        %1776 = vmatprep.subr.mxu0 0.0
        %1777 = vmatpush1.msra.mxu0 0.0
        %1778 = vmatprep.subr.mxu0 0.0
        %1779 = vmatpush1.msra.mxu0 0.0
        %1780 = vmatprep.subr.mxu0 0.0
        %1781 = vmatpush1.msra.mxu0 0.0
        %1782 = vmatprep.mubr.f32.mxu0 0.0
        %v1783 = vand.u32 %v375, 4294901760
        %1784 = vmatmul.mubr.f32.gmra.mrb[0].mxu0 %v1783
        %v1785 = vpop.f32.mrb[0].mxu0
        %v1786 = vadd.f32 %v1712, %v1785
        %v1787 = vpop.f32.mrb[0].mxu0
        %1788 = vdwg.mxu0
        %v1790 = vsel %vm861, %v1313, 0
        %1792 = vmatprep.subr.mxu0 0.0
        %v1793 = vand.u32 %v1790, 4294901760
        %1794 = vmatpush1.msra.mxu0 %v1793
        %1795 = vmatprep.subr.mxu0 0.0
        %1796 = vmatpush1.msra.mxu0 0.0
        %1797 = vmatprep.subr.mxu0 0.0
        %1798 = vmatpush1.msra.mxu0 0.0
        %1799 = vmatprep.subr.mxu0 0.0
        %1800 = vmatpush1.msra.mxu0 0.0
        %1801 = vmatprep.subr.mxu0 0.0
        %1802 = vmatpush1.msra.mxu0 0.0
        %1803 = vmatprep.subr.mxu0 0.0
        %1804 = vmatpush1.msra.mxu0 0.0
        %1805 = vmatprep.subr.mxu0 0.0
        %1806 = vmatpush1.msra.mxu0 0.0
        %1807 = vmatprep.subr.mxu0 0.0
        %1808 = vmatpush1.msra.mxu0 0.0
        %1809 = vmatprep.subr.mxu0 0.0
        %1810 = vmatpush1.msra.mxu0 0.0
        %1811 = vmatprep.subr.mxu0 0.0
        %1812 = vmatpush1.msra.mxu0 0.0
        %1813 = vmatprep.subr.mxu0 0.0
        %1814 = vmatpush1.msra.mxu0 0.0
        %1815 = vmatprep.subr.mxu0 0.0
        %1816 = vmatpush1.msra.mxu0 0.0
        %1817 = vmatprep.subr.mxu0 0.0
        %1818 = vmatpush1.msra.mxu0 0.0
        %1819 = vmatprep.subr.mxu0 0.0
        %1820 = vmatpush1.msra.mxu0 0.0
        %1821 = vmatprep.subr.mxu0 0.0
        %1822 = vmatpush1.msra.mxu0 0.0
        %1823 = vmatprep.subr.mxu0 0.0
        %1824 = vmatpush1.msra.mxu0 0.0
        %1825 = vmatprep.subr.mxu0 0.0
        %1826 = vmatpush1.msra.mxu0 0.0
        %1827 = vmatprep.subr.mxu0 0.0
        %1828 = vmatpush1.msra.mxu0 0.0
        %1829 = vmatprep.subr.mxu0 0.0
        %1830 = vmatpush1.msra.mxu0 0.0
        %1831 = vmatprep.subr.mxu0 0.0
        %1832 = vmatpush1.msra.mxu0 0.0
        %1833 = vmatprep.subr.mxu0 0.0
        %1834 = vmatpush1.msra.mxu0 0.0
        %1835 = vmatprep.subr.mxu0 0.0
        %1836 = vmatpush1.msra.mxu0 0.0
        %1837 = vmatprep.subr.mxu0 0.0
        %1838 = vmatpush1.msra.mxu0 0.0
        %1839 = vmatprep.subr.mxu0 0.0
        %1840 = vmatpush1.msra.mxu0 0.0
        %1841 = vmatprep.subr.mxu0 0.0
        %1842 = vmatpush1.msra.mxu0 0.0
        %1843 = vmatprep.subr.mxu0 0.0
        %1844 = vmatpush1.msra.mxu0 0.0
        %1845 = vmatprep.subr.mxu0 0.0
        %1846 = vmatpush1.msra.mxu0 0.0
        %1847 = vmatprep.subr.mxu0 0.0
        %1848 = vmatpush1.msra.mxu0 0.0
        %1849 = vmatprep.subr.mxu0 0.0
        %1850 = vmatpush1.msra.mxu0 0.0
        %1851 = vmatprep.subr.mxu0 0.0
        %1852 = vmatpush1.msra.mxu0 0.0
        %1853 = vmatprep.subr.mxu0 0.0
        %1854 = vmatpush1.msra.mxu0 0.0
        %1855 = vmatprep.subr.mxu0 0.0
        %1856 = vmatpush1.msra.mxu0 0.0
        %1857 = vmatprep.mubr.f32.mxu0 0.0
        %v1858 = vand.u32 %v859, 4294901760
        %v1859 = vsub.f32 %v859, %v1858
        %v1860 = vand.u32 %v1859, 4294901760
        %v1861 = vsub.f32 %v1859, %v1860
        %v1862 = vand.u32 %v1861, 4294901760
        %1863 = vmatmul.mubr.f32.gmra.mrb[0].mxu0 %v1862
        %v1864 = vpop.f32.mrb[0].mxu0
        %v1865 = vadd.f32 %v1786, %v1864
        %v1866 = vpop.f32.mrb[0].mxu0
        %1867 = vdwg.mxu0
        %1868 = vmatprep.subr.mxu0 0.0
        %v1869 = vand.u32 %v1790, 4294901760
        %v1870 = vsub.f32 %v1790, %v1869
        %v1871 = vand.u32 %v1870, 4294901760
        %v1872 = vsub.f32 %v1870, %v1871
        %v1873 = vand.u32 %v1872, 4294901760
        %1874 = vmatpush1.msra.mxu0 %v1873
        %1875 = vmatprep.subr.mxu0 0.0
        %1876 = vmatpush1.msra.mxu0 0.0
        %1877 = vmatprep.subr.mxu0 0.0
        %1878 = vmatpush1.msra.mxu0 0.0
        %1879 = vmatprep.subr.mxu0 0.0
        %1880 = vmatpush1.msra.mxu0 0.0
        %1881 = vmatprep.subr.mxu0 0.0
        %1882 = vmatpush1.msra.mxu0 0.0
        %1883 = vmatprep.subr.mxu0 0.0
        %1884 = vmatpush1.msra.mxu0 0.0
        %1885 = vmatprep.subr.mxu0 0.0
        %1886 = vmatpush1.msra.mxu0 0.0
        %1887 = vmatprep.subr.mxu0 0.0
        %1888 = vmatpush1.msra.mxu0 0.0
        %1889 = vmatprep.subr.mxu0 0.0
        %1890 = vmatpush1.msra.mxu0 0.0
        %1891 = vmatprep.subr.mxu0 0.0
        %1892 = vmatpush1.msra.mxu0 0.0
        %1893 = vmatprep.subr.mxu0 0.0
        %1894 = vmatpush1.msra.mxu0 0.0
        %1895 = vmatprep.subr.mxu0 0.0
        %1896 = vmatpush1.msra.mxu0 0.0
        %1897 = vmatprep.subr.mxu0 0.0
        %1898 = vmatpush1.msra.mxu0 0.0
        %1899 = vmatprep.subr.mxu0 0.0
        %1900 = vmatpush1.msra.mxu0 0.0
        %1901 = vmatprep.subr.mxu0 0.0
        %1902 = vmatpush1.msra.mxu0 0.0
        %1903 = vmatprep.subr.mxu0 0.0
        %1904 = vmatpush1.msra.mxu0 0.0
        %1905 = vmatprep.subr.mxu0 0.0
        %1906 = vmatpush1.msra.mxu0 0.0
        %1907 = vmatprep.subr.mxu0 0.0
        %1908 = vmatpush1.msra.mxu0 0.0
        %1909 = vmatprep.subr.mxu0 0.0
        %1910 = vmatpush1.msra.mxu0 0.0
        %1911 = vmatprep.subr.mxu0 0.0
        %1912 = vmatpush1.msra.mxu0 0.0
        %1913 = vmatprep.subr.mxu0 0.0
        %1914 = vmatpush1.msra.mxu0 0.0
        %1915 = vmatprep.subr.mxu0 0.0
        %1916 = vmatpush1.msra.mxu0 0.0
        %1917 = vmatprep.subr.mxu0 0.0
        %1918 = vmatpush1.msra.mxu0 0.0
        %1919 = vmatprep.subr.mxu0 0.0
        %1920 = vmatpush1.msra.mxu0 0.0
        %1921 = vmatprep.subr.mxu0 0.0
        %1922 = vmatpush1.msra.mxu0 0.0
        %1923 = vmatprep.subr.mxu0 0.0
        %1924 = vmatpush1.msra.mxu0 0.0
        %1925 = vmatprep.subr.mxu0 0.0
        %1926 = vmatpush1.msra.mxu0 0.0
        %1927 = vmatprep.subr.mxu0 0.0
        %1928 = vmatpush1.msra.mxu0 0.0
        %1929 = vmatprep.subr.mxu0 0.0
        %1930 = vmatpush1.msra.mxu0 0.0
        %1931 = vmatprep.subr.mxu0 0.0
        %1932 = vmatpush1.msra.mxu0 0.0
        %1933 = vmatprep.subr.mxu0 0.0
        %1934 = vmatpush1.msra.mxu0 0.0
        %1935 = vmatprep.subr.mxu0 0.0
        %1936 = vmatpush1.msra.mxu0 0.0
        %1937 = vmatprep.mubr.f32.mxu0 0.0
        %v1938 = vand.u32 %v859, 4294901760
        %1939 = vmatmul.mubr.f32.gmra.mrb[0].mxu0 %v1938
        %v1940 = vpop.f32.mrb[0].mxu0
        %v1941 = vadd.f32 %v1865, %v1940
        %v1942 = vpop.f32.mrb[0].mxu0
        %1943 = vdwg.mxu0
        %1944 = vmatprep.subr.mxu0 0.0
        %v1945 = vand.u32 %v1790, 4294901760
        %v1946 = vsub.f32 %v1790, %v1945
        %1947 = vmatpush1.msra.mxu0 %v1946
        %1948 = vmatprep.subr.mxu0 0.0
        %1949 = vmatpush1.msra.mxu0 0.0
        %1950 = vmatprep.subr.mxu0 0.0
        %1951 = vmatpush1.msra.mxu0 0.0
        %1952 = vmatprep.subr.mxu0 0.0
        %1953 = vmatpush1.msra.mxu0 0.0
        %1954 = vmatprep.subr.mxu0 0.0
        %1955 = vmatpush1.msra.mxu0 0.0
        %1956 = vmatprep.subr.mxu0 0.0
        %1957 = vmatpush1.msra.mxu0 0.0
        %1958 = vmatprep.subr.mxu0 0.0
        %1959 = vmatpush1.msra.mxu0 0.0
        %1960 = vmatprep.subr.mxu0 0.0
        %1961 = vmatpush1.msra.mxu0 0.0
        %1962 = vmatprep.subr.mxu0 0.0
        %1963 = vmatpush1.msra.mxu0 0.0
        %1964 = vmatprep.subr.mxu0 0.0
        %1965 = vmatpush1.msra.mxu0 0.0
        %1966 = vmatprep.subr.mxu0 0.0
        %1967 = vmatpush1.msra.mxu0 0.0
        %1968 = vmatprep.subr.mxu0 0.0
        %1969 = vmatpush1.msra.mxu0 0.0
        %1970 = vmatprep.subr.mxu0 0.0
        %1971 = vmatpush1.msra.mxu0 0.0
        %1972 = vmatprep.subr.mxu0 0.0
        %1973 = vmatpush1.msra.mxu0 0.0
        %1974 = vmatprep.subr.mxu0 0.0
        %1975 = vmatpush1.msra.mxu0 0.0
        %1976 = vmatprep.subr.mxu0 0.0
        %1977 = vmatpush1.msra.mxu0 0.0
        %1978 = vmatprep.subr.mxu0 0.0
        %1979 = vmatpush1.msra.mxu0 0.0
        %1980 = vmatprep.subr.mxu0 0.0
        %1981 = vmatpush1.msra.mxu0 0.0
        %1982 = vmatprep.subr.mxu0 0.0
        %1983 = vmatpush1.msra.mxu0 0.0
        %1984 = vmatprep.subr.mxu0 0.0
        %1985 = vmatpush1.msra.mxu0 0.0
        %1986 = vmatprep.subr.mxu0 0.0
        %1987 = vmatpush1.msra.mxu0 0.0
        %1988 = vmatprep.subr.mxu0 0.0
        %1989 = vmatpush1.msra.mxu0 0.0
        %1990 = vmatprep.subr.mxu0 0.0
        %1991 = vmatpush1.msra.mxu0 0.0
        %1992 = vmatprep.subr.mxu0 0.0
        %1993 = vmatpush1.msra.mxu0 0.0
        %1994 = vmatprep.subr.mxu0 0.0
        %1995 = vmatpush1.msra.mxu0 0.0
        %1996 = vmatprep.subr.mxu0 0.0
        %1997 = vmatpush1.msra.mxu0 0.0
        %1998 = vmatprep.subr.mxu0 0.0
        %1999 = vmatpush1.msra.mxu0 0.0
        %2000 = vmatprep.subr.mxu0 0.0
        %2001 = vmatpush1.msra.mxu0 0.0
        %2002 = vmatprep.subr.mxu0 0.0
        %2003 = vmatpush1.msra.mxu0 0.0
        %2004 = vmatprep.subr.mxu0 0.0
        %2005 = vmatpush1.msra.mxu0 0.0
        %2006 = vmatprep.subr.mxu0 0.0
        %2007 = vmatpush1.msra.mxu0 0.0
        %2008 = vmatprep.subr.mxu0 0.0
        %2009 = vmatpush1.msra.mxu0 0.0
        %2010 = vmatprep.mubr.f32.mxu0 0.0
        %v2011 = vand.u32 %v859, 4294901760
        %v2012 = vsub.f32 %v859, %v2011
        %2013 = vmatmul.mubr.f32.gmra.mrb[0].mxu0 %v2012
        %v2014 = vpop.f32.mrb[0].mxu0
        %v2015 = vadd.f32 %v1941, %v2014
        %v2016 = vpop.f32.mrb[0].mxu0
        %2017 = vdwg.mxu0
        %2018 = vmatprep.subr.mxu0 0.0
        %v2019 = vand.u32 %v1790, 4294901760
        %2020 = vmatpush1.msra.mxu0 %v2019
        %2021 = vmatprep.subr.mxu0 0.0
        %2022 = vmatpush1.msra.mxu0 0.0
        %2023 = vmatprep.subr.mxu0 0.0
        %2024 = vmatpush1.msra.mxu0 0.0
        %2025 = vmatprep.subr.mxu0 0.0
        %2026 = vmatpush1.msra.mxu0 0.0
        %2027 = vmatprep.subr.mxu0 0.0
        %2028 = vmatpush1.msra.mxu0 0.0
        %2029 = vmatprep.subr.mxu0 0.0
        %2030 = vmatpush1.msra.mxu0 0.0
        %2031 = vmatprep.subr.mxu0 0.0
        %2032 = vmatpush1.msra.mxu0 0.0
        %2033 = vmatprep.subr.mxu0 0.0
        %2034 = vmatpush1.msra.mxu0 0.0
        %2035 = vmatprep.subr.mxu0 0.0
        %2036 = vmatpush1.msra.mxu0 0.0
        %2037 = vmatprep.subr.mxu0 0.0
        %2038 = vmatpush1.msra.mxu0 0.0
        %2039 = vmatprep.subr.mxu0 0.0
        %2040 = vmatpush1.msra.mxu0 0.0
        %2041 = vmatprep.subr.mxu0 0.0
        %2042 = vmatpush1.msra.mxu0 0.0
        %2043 = vmatprep.subr.mxu0 0.0
        %2044 = vmatpush1.msra.mxu0 0.0
        %2045 = vmatprep.subr.mxu0 0.0
        %2046 = vmatpush1.msra.mxu0 0.0
        %2047 = vmatprep.subr.mxu0 0.0
        %2048 = vmatpush1.msra.mxu0 0.0
        %2049 = vmatprep.subr.mxu0 0.0
        %2050 = vmatpush1.msra.mxu0 0.0
        %2051 = vmatprep.subr.mxu0 0.0
        %2052 = vmatpush1.msra.mxu0 0.0
        %2053 = vmatprep.subr.mxu0 0.0
        %2054 = vmatpush1.msra.mxu0 0.0
        %2055 = vmatprep.subr.mxu0 0.0
        %2056 = vmatpush1.msra.mxu0 0.0
        %2057 = vmatprep.subr.mxu0 0.0
        %2058 = vmatpush1.msra.mxu0 0.0
        %2059 = vmatprep.subr.mxu0 0.0
        %2060 = vmatpush1.msra.mxu0 0.0
        %2061 = vmatprep.subr.mxu0 0.0
        %2062 = vmatpush1.msra.mxu0 0.0
        %2063 = vmatprep.subr.mxu0 0.0
        %2064 = vmatpush1.msra.mxu0 0.0
        %2065 = vmatprep.subr.mxu0 0.0
        %2066 = vmatpush1.msra.mxu0 0.0
        %2067 = vmatprep.subr.mxu0 0.0
        %2068 = vmatpush1.msra.mxu0 0.0
        %2069 = vmatprep.subr.mxu0 0.0
        %2070 = vmatpush1.msra.mxu0 0.0
        %2071 = vmatprep.subr.mxu0 0.0
        %2072 = vmatpush1.msra.mxu0 0.0
        %2073 = vmatprep.subr.mxu0 0.0
        %2074 = vmatpush1.msra.mxu0 0.0
        %2075 = vmatprep.subr.mxu0 0.0
        %2076 = vmatpush1.msra.mxu0 0.0
        %2077 = vmatprep.subr.mxu0 0.0
        %2078 = vmatpush1.msra.mxu0 0.0
        %2079 = vmatprep.subr.mxu0 0.0
        %2080 = vmatpush1.msra.mxu0 0.0
        %2081 = vmatprep.subr.mxu0 0.0
        %2082 = vmatpush1.msra.mxu0 0.0
        %2083 = vmatprep.mubr.f32.mxu0 0.0
        %v2084 = vand.u32 %v859, 4294901760
        %v2085 = vsub.f32 %v859, %v2084
        %v2086 = vand.u32 %v2085, 4294901760
        %2087 = vmatmul.mubr.f32.gmra.mrb[0].mxu0 %v2086
        %v2088 = vpop.f32.mrb[0].mxu0
        %v2089 = vadd.f32 %v2015, %v2088
        %v2090 = vpop.f32.mrb[0].mxu0
        %2091 = vdwg.mxu0
        %2092 = vmatprep.subr.mxu0 0.0
        %v2093 = vand.u32 %v1790, 4294901760
        %v2094 = vsub.f32 %v1790, %v2093
        %v2095 = vand.u32 %v2094, 4294901760
        %2096 = vmatpush1.msra.mxu0 %v2095
        %2097 = vmatprep.subr.mxu0 0.0
        %2098 = vmatpush1.msra.mxu0 0.0
        %2099 = vmatprep.subr.mxu0 0.0
        %2100 = vmatpush1.msra.mxu0 0.0
        %2101 = vmatprep.subr.mxu0 0.0
        %2102 = vmatpush1.msra.mxu0 0.0
        %2103 = vmatprep.subr.mxu0 0.0
        %2104 = vmatpush1.msra.mxu0 0.0
        %2105 = vmatprep.subr.mxu0 0.0
        %2106 = vmatpush1.msra.mxu0 0.0
        %2107 = vmatprep.subr.mxu0 0.0
        %2108 = vmatpush1.msra.mxu0 0.0
        %2109 = vmatprep.subr.mxu0 0.0
        %2110 = vmatpush1.msra.mxu0 0.0
        %2111 = vmatprep.subr.mxu0 0.0
        %2112 = vmatpush1.msra.mxu0 0.0
        %2113 = vmatprep.subr.mxu0 0.0
        %2114 = vmatpush1.msra.mxu0 0.0
        %2115 = vmatprep.subr.mxu0 0.0
        %2116 = vmatpush1.msra.mxu0 0.0
        %2117 = vmatprep.subr.mxu0 0.0
        %2118 = vmatpush1.msra.mxu0 0.0
        %2119 = vmatprep.subr.mxu0 0.0
        %2120 = vmatpush1.msra.mxu0 0.0
        %2121 = vmatprep.subr.mxu0 0.0
        %2122 = vmatpush1.msra.mxu0 0.0
        %2123 = vmatprep.subr.mxu0 0.0
        %2124 = vmatpush1.msra.mxu0 0.0
        %2125 = vmatprep.subr.mxu0 0.0
        %2126 = vmatpush1.msra.mxu0 0.0
        %2127 = vmatprep.subr.mxu0 0.0
        %2128 = vmatpush1.msra.mxu0 0.0
        %2129 = vmatprep.subr.mxu0 0.0
        %2130 = vmatpush1.msra.mxu0 0.0
        %2131 = vmatprep.subr.mxu0 0.0
        %2132 = vmatpush1.msra.mxu0 0.0
        %2133 = vmatprep.subr.mxu0 0.0
        %2134 = vmatpush1.msra.mxu0 0.0
        %2135 = vmatprep.subr.mxu0 0.0
        %2136 = vmatpush1.msra.mxu0 0.0
        %2137 = vmatprep.subr.mxu0 0.0
        %2138 = vmatpush1.msra.mxu0 0.0
        %2139 = vmatprep.subr.mxu0 0.0
        %2140 = vmatpush1.msra.mxu0 0.0
        %2141 = vmatprep.subr.mxu0 0.0
        %2142 = vmatpush1.msra.mxu0 0.0
        %2143 = vmatprep.subr.mxu0 0.0
        %2144 = vmatpush1.msra.mxu0 0.0
        %2145 = vmatprep.subr.mxu0 0.0
        %2146 = vmatpush1.msra.mxu0 0.0
        %2147 = vmatprep.subr.mxu0 0.0
        %2148 = vmatpush1.msra.mxu0 0.0
        %2149 = vmatprep.subr.mxu0 0.0
        %2150 = vmatpush1.msra.mxu0 0.0
        %2151 = vmatprep.subr.mxu0 0.0
        %2152 = vmatpush1.msra.mxu0 0.0
        %2153 = vmatprep.subr.mxu0 0.0
        %2154 = vmatpush1.msra.mxu0 0.0
        %2155 = vmatprep.subr.mxu0 0.0
        %2156 = vmatpush1.msra.mxu0 0.0
        %2157 = vmatprep.subr.mxu0 0.0
        %2158 = vmatpush1.msra.mxu0 0.0
        %2159 = vmatprep.mubr.f32.mxu0 0.0
        %v2160 = vand.u32 %v859, 4294901760
        %2161 = vmatmul.mubr.f32.gmra.mrb[0].mxu0 %v2160
        %v2162 = vpop.f32.mrb[0].mxu0
        %v2163 = vadd.f32 %v2089, %v2162
        %v2164 = vpop.f32.mrb[0].mxu0
        %2165 = vdwg.mxu0
        %2166 = vmatprep.subr.mxu0 0.0
        %v2167 = vand.u32 %v1790, 4294901760
        %2168 = vmatpush1.msra.mxu0 %v2167
        %2169 = vmatprep.subr.mxu0 0.0
        %2170 = vmatpush1.msra.mxu0 0.0
        %2171 = vmatprep.subr.mxu0 0.0
        %2172 = vmatpush1.msra.mxu0 0.0
        %2173 = vmatprep.subr.mxu0 0.0
        %2174 = vmatpush1.msra.mxu0 0.0
        %2175 = vmatprep.subr.mxu0 0.0
        %2176 = vmatpush1.msra.mxu0 0.0
        %2177 = vmatprep.subr.mxu0 0.0
        %2178 = vmatpush1.msra.mxu0 0.0
        %2179 = vmatprep.subr.mxu0 0.0
        %2180 = vmatpush1.msra.mxu0 0.0
        %2181 = vmatprep.subr.mxu0 0.0
        %2182 = vmatpush1.msra.mxu0 0.0
        %2183 = vmatprep.subr.mxu0 0.0
        %2184 = vmatpush1.msra.mxu0 0.0
        %2185 = vmatprep.subr.mxu0 0.0
        %2186 = vmatpush1.msra.mxu0 0.0
        %2187 = vmatprep.subr.mxu0 0.0
        %2188 = vmatpush1.msra.mxu0 0.0
        %2189 = vmatprep.subr.mxu0 0.0
        %2190 = vmatpush1.msra.mxu0 0.0
        %2191 = vmatprep.subr.mxu0 0.0
        %2192 = vmatpush1.msra.mxu0 0.0
        %2193 = vmatprep.subr.mxu0 0.0
        %2194 = vmatpush1.msra.mxu0 0.0
        %2195 = vmatprep.subr.mxu0 0.0
        %2196 = vmatpush1.msra.mxu0 0.0
        %2197 = vmatprep.subr.mxu0 0.0
        %2198 = vmatpush1.msra.mxu0 0.0
        %2199 = vmatprep.subr.mxu0 0.0
        %2200 = vmatpush1.msra.mxu0 0.0
        %2201 = vmatprep.subr.mxu0 0.0
        %2202 = vmatpush1.msra.mxu0 0.0
        %2203 = vmatprep.subr.mxu0 0.0
        %2204 = vmatpush1.msra.mxu0 0.0
        %2205 = vmatprep.subr.mxu0 0.0
        %2206 = vmatpush1.msra.mxu0 0.0
        %2207 = vmatprep.subr.mxu0 0.0
        %2208 = vmatpush1.msra.mxu0 0.0
        %2209 = vmatprep.subr.mxu0 0.0
        %2210 = vmatpush1.msra.mxu0 0.0
        %2211 = vmatprep.subr.mxu0 0.0
        %2212 = vmatpush1.msra.mxu0 0.0
        %2213 = vmatprep.subr.mxu0 0.0
        %2214 = vmatpush1.msra.mxu0 0.0
        %2215 = vmatprep.subr.mxu0 0.0
        %2216 = vmatpush1.msra.mxu0 0.0
        %2217 = vmatprep.subr.mxu0 0.0
        %2218 = vmatpush1.msra.mxu0 0.0
        %2219 = vmatprep.subr.mxu0 0.0
        %2220 = vmatpush1.msra.mxu0 0.0
        %2221 = vmatprep.subr.mxu0 0.0
        %2222 = vmatpush1.msra.mxu0 0.0
        %2223 = vmatprep.subr.mxu0 0.0
        %2224 = vmatpush1.msra.mxu0 0.0
        %2225 = vmatprep.subr.mxu0 0.0
        %2226 = vmatpush1.msra.mxu0 0.0
        %2227 = vmatprep.subr.mxu0 0.0
        %2228 = vmatpush1.msra.mxu0 0.0
        %2229 = vmatprep.subr.mxu0 0.0
        %2230 = vmatpush1.msra.mxu0 0.0
        %2231 = vmatprep.mubr.f32.mxu0 0.0
        %v2232 = vand.u32 %v859, 4294901760
        %2233 = vmatmul.mubr.f32.gmra.mrb[0].mxu0 %v2232
        %v2234 = vpop.f32.mrb[0].mxu0
        %v2235 = vadd.f32 %v2163, %v2234
        %v2236 = vpop.f32.mrb[0].mxu0
        %2237 = vdwg.mxu0
        %2238 = vst.msk [vmem:[%s321] sm:$0xff] %vm362, %v2235
        %p2239 = scmp.lt.s32.totalorder %s26, 1
        %s2240 = scalar_select %p2239, %s26, 1
        %s2241 = smul.addr %s2240, 8
        %s2242 = scalar_lea.vmem %s6, %s2241
        %s2243 = sand.u32 %s191, 1
        %s2244 = scalar_lea.sflag [#allocation3], %s2243
        %s2245 = sand.u32 %s191, 1
        %s2246 = smul.addr %s2245, 8
        %s2247 = scalar_lea.vmem [#allocation2], %s2246
        %s2248 = sand.u32 %s217, 1
        %s2249 = scalar_lea.sflag [#allocation5], %s2248
        %s2250 = sand.u32 %s217, 1
        %s2251 = smul.addr %s2250, 8
        %s2252 = scalar_lea.vmem [#allocation4], %s2251
        // Predicated region
        $region45: #{tpu_custom_call.1} parent=43 // pred_check
          %p2253 = pneg %p175
        $region46: #{tpu_custom_call.1} parent=43 // pred_check_branch
          %2255 = sbr.rel (%p2253) target = $region48
        $region47: #{tpu_custom_call.1} parent=43 // pred_region
          _
        $region48: #{tpu_custom_call.1} parent=43 // pred_fallthru
          _
        // Predicated region
        $region49: #{tpu_custom_call.1} parent=43 // pred_check
          %p2256 = pneg %p201
        $region50: #{tpu_custom_call.1} parent=43 // pred_check_branch
          %2258 = sbr.rel (%p2256) target = $region52
        $region51: #{tpu_custom_call.1} parent=43 // pred_region
          %s2260 = ssub.s32 128, 128
          %2261 = vsyncadd %s2244, %s2260
          %s2262 = smul.addr %s26, 128
          %s2263 = scalar_lea.hbm %s7, %s2262
          %s2265 = sshll.u32 %s2247, 4
          %s2266 = int_to_ptr.vmem [resolvable:$true] %s2265
          %2268 = dma.vmem_to_hbm [thread:$0]  %s2266, 128, %s2263, %s2244
        $region52: #{tpu_custom_call.1} parent=43 // pred_fallthru
          _
        // Predicated region
        $region53: #{tpu_custom_call.1} parent=43 // pred_check
          %p2269 = pneg %p227
        $region54: #{tpu_custom_call.1} parent=43 // pred_check_branch
          %2271 = sbr.rel (%p2269) target = $region56
        $region55: #{tpu_custom_call.1} parent=43 // pred_region
          %s2273 = ssub.s32 128, 128
          %2274 = vsyncadd %s2249, %s2273
          %s2275 = smul.addr %s26, 128
          %s2276 = scalar_lea.hbm %s8, %s2275
          %s2278 = sshll.u32 %s2252, 4
          %s2279 = int_to_ptr.vmem [resolvable:$true] %s2278
          %2281 = dma.vmem_to_hbm [thread:$0]  %s2279, 128, %s2276, %s2249
        $region56: #{tpu_custom_call.1} parent=43 // pred_fallthru
          _
      $region44: #{tpu_custom_call.1} parent=5 // pred_fallthru
        _
      %p2282 = scmp.le.s32.totalorder 2, %s21
      // Predicated region
      $region57: #{tpu_custom_call.1} parent=5 // pred_check
        %p2283 = pneg %p2282
      $region58: #{tpu_custom_call.1} parent=5 // pred_check_branch
        %2285 = sbr.rel (%p2283) target = $region60
      $region59: #{tpu_custom_call.1} parent=5 // pred_region
        %s2286 = ssub.s32 %s21, 2
        // Predicated region
        $region61: #{tpu_custom_call.1} parent=59 // pred_check
          %p2287 = pneg %p181
        $region62: #{tpu_custom_call.1} parent=59 // pred_check_branch
          %2289 = sbr.rel (%p2287) target = $region64
        $region63: #{tpu_custom_call.1} parent=59 // pred_region
          %p2290 = scmp.lt.s32.totalorder %s27, 1
          %s2291 = scalar_select %p2290, %s27, 1
          %s2292 = smul.addr %s2291, 8
          %s2293 = scalar_lea.vmem %s6, %s2292
        $region64: #{tpu_custom_call.1} parent=59 // pred_fallthru
          _
        // Predicated region
        $region65: #{tpu_custom_call.1} parent=59 // pred_check
          %p2294 = pneg %p207
        $region66: #{tpu_custom_call.1} parent=59 // pred_check_branch
          %2296 = sbr.rel (%p2294) target = $region68
        $region67: #{tpu_custom_call.1} parent=59 // pred_region
          %s2297 = sand.u32 %s192, 1
          %s2298 = scalar_lea.sflag [#allocation3], %s2297
          %s2299 = sand.u32 %s192, 1
          %s2300 = smul.addr %s2299, 8
          %s2301 = scalar_lea.vmem [#allocation2], %s2300
          %2302 = dma.done %s2298, 128
        $region68: #{tpu_custom_call.1} parent=59 // pred_fallthru
          _
        // Predicated region
        $region69: #{tpu_custom_call.1} parent=59 // pred_check
          %p2303 = pneg %p233
        $region70: #{tpu_custom_call.1} parent=59 // pred_check_branch
          %2305 = sbr.rel (%p2303) target = $region72
        $region71: #{tpu_custom_call.1} parent=59 // pred_region
          %s2306 = sand.u32 %s218, 1
          %s2307 = scalar_lea.sflag [#allocation5], %s2306
          %s2308 = sand.u32 %s218, 1
          %s2309 = smul.addr %s2308, 8
          %s2310 = scalar_lea.vmem [#allocation4], %s2309
          %2311 = dma.done %s2307, 128
        $region72: #{tpu_custom_call.1} parent=59 // pred_fallthru
          _
      $region60: #{tpu_custom_call.1} parent=5 // pred_fallthru
        _
    $region6: #{tpu_custom_call.1} parent=1 // loop_footer
      %s25 = sadd.s32 1, %s21
    $region7: #{tpu_custom_call.1} parent=1 // loop_footer_branch
      %20 = sbr.rel target = $region3
    $region8: #{tpu_custom_call.1} parent=1 // loop_exit
      _
    %2312 = vsyncpa [#allocation3], 1
    %s2313 = scalar_lea.sflag [#allocation3], 1
    %2314 = vsyncpa %s2313, 1
    %2315 = vsyncpa [#allocation5], 1
    %s2316 = scalar_lea.sflag [#allocation5], 1
    %2317 = vsyncpa %s2316, 1

</llo_original>
